<compile_context>
chip_gen: v5e
topology: v5e:2x2
jax: 0.10.0
libtpu: 0.0.40
codegen_flags: <defaults>
</compile_context>

<pallas_src>
import functools

import jax
import jax.numpy as jnp
from jax.experimental import pallas as pl
from jax.experimental.pallas import tpu as pltpu

_MASK_FILL = -1e30  # finite fill (avoids -inf NaN edge cases)


@functools.lru_cache(maxsize=None)
def _vmem_limit():
    """Generation-aware scoped-VMEM limit: ~half of per-core VMEM (64 MiB on
    v5e/v6e, 32 MiB on v7x) so Mosaic internal scratch and neighbouring XLA
    fusions keep headroom (perf-review item)."""
    try:
        cap = int(pltpu.get_tpu_info().vmem_capacity_bytes)
    except Exception:  # not queryable -> assume a 128 MiB part
        cap = 128 * 1024 * 1024
    return int(max(32 * 1024 * 1024, min(64 * 1024 * 1024, cap // 2)))


def _const_spec(shape):
    """BlockSpec for a grid-constant operand (weight / bias): constant
    index_map (block fetched once, re-used every step) and single buffering,
    since double-buffering a constant block buys nothing."""
    index_map = lambda *_: (0,) * len(shape)
    try:
        return pl.BlockSpec(shape, index_map, pipeline_mode=pl.Buffered(1))
    except Exception:  # older API without pipeline_mode -> default buffering
        return pl.BlockSpec(shape, index_map)


def _pick_block(n, cap, requested=None):
    """Largest legal tile: `requested` if given, else the largest divisor of n
    that is <= cap and a multiple of 8 (sublane granularity); falls back to
    the full extent (always a legal block)."""
    if requested is not None:
        blk = min(requested, n)
    else:
        blk = min(n, cap)
        while blk > 8 and not (n % blk == 0 and blk % 8 == 0):
            blk -= 1
        if n % blk != 0 or (blk % 8 != 0 and blk != n):
            blk = n
    assert n % blk == 0, "size must be divisible by the tile size"
    return blk


# ---------------------------------------------------------------------------
# Kernel 1: fused QKV projection   [q | k | v] = x @ [Wq*scale | Wk | Wv]
# Rows are the flattened (B*T) axis; q/k/v are emitted as three separate
# outputs (no wrapper-side split / transpose).
# ---------------------------------------------------------------------------
def _qkv_proj_kernel(x_ref, wqkv_ref, q_ref, k_ref, v_ref):
    x = x_ref[...].astype(jnp.bfloat16)                       # (tr, d_in)
    qkv = jnp.dot(x, wqkv_ref[...],                            # one wide MXU matmul
                  preferred_element_type=jnp.float32)          # (tr, 3*d_out) f32
    d = q_ref.shape[-1]
    q_ref[...] = qkv[:, :d].astype(q_ref.dtype)
    k_ref[...] = qkv[:, d:2 * d].astype(k_ref.dtype)
    v_ref[...] = qkv[:, 2 * d:].astype(v_ref.dtype)


def _qkv_projection(x2d, wqkv, d_out, *, block_r):
    rows, d_in = x2d.shape
    d3 = wqkv.shape[1]
    out = jax.ShapeDtypeStruct((rows, d_out), jnp.bfloat16)
    row_spec = pl.BlockSpec((block_r, d_out), lambda r: (r, 0))
    return pl.pallas_call(
        _qkv_proj_kernel,
        out_shape=(out, out, out),
        grid_spec=pltpu.PrefetchScalarGridSpec(
            num_scalar_prefetch=0,
            grid=(rows // block_r,),
            in_specs=[
                pl.BlockSpec((block_r, d_in), lambda r: (r, 0)),
                _const_spec((d_in, d3)),                       # resident fused weight
            ],
            out_specs=(row_spec, row_spec, row_spec),
        ),
        compiler_params=pltpu.CompilerParams(
            dimension_semantics=("parallel",),
            vmem_limit_bytes=_vmem_limit()),
    )(x2d, wqkv)


# ---------------------------------------------------------------------------
# Kernel 2: causal flash attention, (B, T, d_out) layout in and out,
# online softmax, per-head static lane slices in-VMEM (no HBM head transpose).
# ---------------------------------------------------------------------------
def _flash_attn_kernel(q_ref, k_ref, v_ref, o_ref, m_sc, l_sc, acc_sc, *,
                       num_heads):
    H = num_heads
    hd = q_ref.shape[-1] // H
    tq = q_ref.shape[1]
    tk = k_ref.shape[1]
    qi = pl.program_id(1)
    ki = pl.program_id(2)

    @pl.when(ki == 0)
    def _init():
        m_sc[...] = jnp.full(m_sc.shape, _MASK_FILL, dtype=m_sc.dtype)
        l_sc[...] = jnp.zeros(l_sc.shape, dtype=l_sc.dtype)
        acc_sc[...] = jnp.zeros(acc_sc.shape, dtype=acc_sc.dtype)

    def _update(apply_mask):
        q = q_ref[0]                                           # (tq, d_out) bf16, pre-scaled by 1/sqrt(hd)
        k = k_ref[0]                                           # (tk, d_out) bf16
        v = v_ref[0]                                           # (tk, d_out) bf16
        if apply_mask:
            # Diagonal tile only (ki == qi, tq == tk): local causal mask.
            rows = jax.lax.broadcasted_iota(jnp.int32, (tq, tk), 0)
            cols = jax.lax.broadcasted_iota(jnp.int32, (tq, tk), 1)
            neg = jnp.where(cols <= rows, jnp.float32(0.0),
                            jnp.float32(_MASK_FILL))
        for h in range(H):                                     # static unroll over heads
            sl = slice(h * hd, (h + 1) * hd)
            # Head score matmul, contracting hd directly (no K transpose).
            s = jax.lax.dot_general(q[:, sl], k[:, sl],
                                    (((1,), (1,)), ((), ())),
                                    preferred_element_type=jnp.float32)  # (tq, tk)
            if apply_mask:
                s = s + neg
            m_prev = m_sc[h]                                   # (tq, 1)
            m_new = jnp.maximum(m_prev, s.max(axis=-1, keepdims=True))
            alpha = jnp.exp(m_prev - m_new)
            p = jnp.exp(s - m_new)                             # (tq, tk)
            l_sc[h] = alpha * l_sc[h] + p.sum(axis=-1, keepdims=True)
            # TODO(synk): attention-weight dropout omitted (identity / eval mode).
            acc_sc[h] = alpha * acc_sc[h] + jnp.dot(
                p.astype(jnp.bfloat16), v[:, sl],
                preferred_element_type=jnp.float32)
            m_sc[h] = m_new

    @pl.when(ki < qi)
    def _full_tiles():          # strictly-past KV tiles: no mask work at all
        _update(apply_mask=False)

    @pl.when(ki == qi)
    def _diag_tile():           # diagonal tile: causal mask needed
        _update(apply_mask=True)

    # Finalize on the last *processed* KV tile (ki == qi, valid since
    # block_q == block_kv).  Future tiles (ki > qi) do nothing, and their K/V
    # DMAs are elided via the clamped index_map in _flash_attention.
    @pl.when(ki == qi)
    def _finalize():
        inv_l = pl.reciprocal(l_sc[...], approx=True)          # (H, tq, 1) on the EUP
        parts = [(acc_sc[h] * inv_l[h]).astype(o_ref.dtype) for h in range(H)]
        # Head merge in-VMEM -> lane-dense (tq, d_out) store, and the HBM
        # output is already (B, T, d_out): no wrapper-side merge transpose.
        o_ref[0] = jnp.concatenate(parts, axis=-1)


def _flash_attention(q, k, v, *, num_heads, block_q, block_kv):
    B, T, d_out = q.shape
    H = num_heads
    hd = d_out // H

    # Clamp the KV block index so fully-masked (future) tiles re-use the
    # previous block => Pallas elides their DMA (causal KV-traffic dedup).
    kv_map = lambda b, qi, ki: (b, jnp.minimum(ki, qi), 0)

    return pl.pallas_call(
        functools.partial(_flash_attn_kernel, num_heads=H),
        out_shape=jax.ShapeDtypeStruct((B, T, d_out), jnp.bfloat16),
        grid_spec=pltpu.PrefetchScalarGridSpec(
            num_scalar_prefetch=0,
            grid=(B, T // block_q, T // block_kv),
            in_specs=[
                pl.BlockSpec((1, block_q, d_out), lambda b, qi, ki: (b, qi, 0)),
                pl.BlockSpec((1, block_kv, d_out), kv_map),
                pl.BlockSpec((1, block_kv, d_out), kv_map),
            ],
            out_specs=pl.BlockSpec((1, block_q, d_out),
                                   lambda b, qi, ki: (b, qi, 0)),
            scratch_shapes=[
                pltpu.VMEM((H, block_q, 1), jnp.float32),      # running max m
                pltpu.VMEM((H, block_q, 1), jnp.float32),      # running denom l
                pltpu.VMEM((H, block_q, hd), jnp.float32),     # output accumulator
            ],
        ),
        compiler_params=pltpu.CompilerParams(
            dimension_semantics=("parallel", "parallel", "arbitrary"),
            vmem_limit_bytes=_vmem_limit()),
    )(q, k, v)


# ---------------------------------------------------------------------------
# Kernel 3: output projection   out = ctx @ Wo + b   (flattened rows)
# ---------------------------------------------------------------------------
def _out_proj_kernel(x_ref, w_ref, b_ref, o_ref):
    x = x_ref[...].astype(jnp.bfloat16)                        # (tr, d_out)
    y = jnp.dot(x, w_ref[...], preferred_element_type=jnp.float32)
    o_ref[...] = (y + b_ref[...]).astype(o_ref.dtype)


def _out_projection(ctx2d, wo, bo2, *, block_r, out_dtype):
    rows, d_out = ctx2d.shape
    return pl.pallas_call(
        _out_proj_kernel,
        out_shape=jax.ShapeDtypeStruct((rows, d_out), out_dtype),
        grid_spec=pltpu.PrefetchScalarGridSpec(
            num_scalar_prefetch=0,
            grid=(rows // block_r,),
            in_specs=[
                pl.BlockSpec((block_r, d_out), lambda r: (r, 0)),
                _const_spec((d_out, d_out)),
                _const_spec((1, d_out)),
            ],
            out_specs=pl.BlockSpec((block_r, d_out), lambda r: (r, 0)),
        ),
        compiler_params=pltpu.CompilerParams(
            dimension_semantics=("parallel",),
            vmem_limit_bytes=_vmem_limit()),
    )(ctx2d, wo, bo2)


# ---------------------------------------------------------------------------
# Full forward pass (matches MultiHeadAttention.forward, dropout = identity)
# ---------------------------------------------------------------------------
@functools.partial(jax.jit,
                   static_argnames=("num_heads", "block_q", "block_kv",
                                    "block_rows"))
def multi_head_attention(x, wq, wk, wv, wo, bo, *, num_heads,
                         block_q=None, block_kv=None, block_rows=None):
    """x: (B, T, d_in); wq/wk/wv: (d_in, d_out); wo: (d_out, d_out); bo: (d_out,)."""
    B, T, d_in = x.shape
    d_out = wq.shape[1]
    H = num_heads
    hd = d_out // H

    # 256 attention tiles / up to 512 projection rows fill the 256-wide MXU on
    # v6e/v7x; falls back to smaller divisors (or full extent) for small T.
    block_q = _pick_block(T, 256, block_q)
    block_kv = _pick_block(T, 256, block_kv)
    assert block_q == block_kv, \
        "use tq == tkv so the causal skip/finalize-on-diagonal logic holds"
    block_rows = _pick_block(B * T, 512, block_rows)

    # Fused QKV weight; 1/sqrt(head_dim) folded into the Q columns (== scaling
    # q once).  Weights cast to bf16 once (halves weight DMA; MXU-native).
    scale = 1.0 / (hd ** 0.5)
    wqkv = jnp.concatenate([wq * scale, wk, wv], axis=1).astype(jnp.bfloat16)

    # 1) fused QKV projection over flattened (B*T) rows (Pallas).
    x2d = x.reshape(B * T, d_in)                               # contiguous, free
    q2d, k2d, v2d = _qkv_projection(x2d, wqkv, d_out, block_r=block_rows)
    q = q2d.reshape(B, T, d_out)                               # contiguous, free
    k = k2d.reshape(B, T, d_out)
    v = v2d.reshape(B, T, d_out)

    # 2) causal flash attention, heads split/merged in-VMEM (Pallas).
    ctx = _flash_attention(q, k, v, num_heads=H,
                           block_q=block_q, block_kv=block_kv)  # (B, T, d_out) bf16

    # 3) output projection (Pallas).
    out2d = _out_projection(ctx.reshape(B * T, d_out),
                            wo.astype(jnp.bfloat16),
                            bo.reshape(1, d_out).astype(jnp.float32),
                            block_r=block_rows, out_dtype=x.dtype)
    return out2d.reshape(B, T, d_out)


if __name__ == "__main__":
    # Small shapes consistent with the module's forward:
    #   batch=2, seq(context_length)=16, d_in=32, d_out=32, num_of_head=4
    # (T=16 with 8-wide tiles exercises the multi-tile online softmax, the
    #  diagonal-only masking and the clamped/elided future-KV DMA path.)
    B, T, d_in, d_out, num_heads = 2, 16, 32, 32, 4

    key = jax.random.PRNGKey(0)
    kx, kq, kk, kv, ko, kb = jax.random.split(key, 6)

    x = jax.random.normal(kx, (B, T, d_in), dtype=jnp.float32)

    # Deterministic parameter init (qkv_bias=False; out_proj has bias).
    wq = jax.random.normal(kq, (d_in, d_out), dtype=jnp.float32) * 0.1
    wk = jax.random.normal(kk, (d_in, d_out), dtype=jnp.float32) * 0.1
    wv = jax.random.normal(kv, (d_in, d_out), dtype=jnp.float32) * 0.1
    wo = jax.random.normal(ko, (d_out, d_out), dtype=jnp.float32) * 0.1
    bo = jax.random.normal(kb, (d_out,), dtype=jnp.float32) * 0.1

    out = multi_head_attention(x, wq, wk, wv, wo, bo, num_heads=num_heads,
                               block_q=8, block_kv=8, block_rows=8)
    out = jax.block_until_ready(out)

    # Pure-JAX f32 reference of the PyTorch forward.
    def ref(x):
        hd = d_out // num_heads
        q = (x @ wq).reshape(B, T, num_heads, hd).transpose(0, 2, 1, 3)
        k = (x @ wk).reshape(B, T, num_heads, hd).transpose(0, 2, 1, 3)
        v = (x @ wv).reshape(B, T, num_heads, hd).transpose(0, 2, 1, 3)
        s = jnp.einsum("bhqd,bhkd->bhqk", q, k)
        mask = jnp.triu(jnp.ones((T, T), dtype=bool), k=1)
        s = jnp.where(mask, -jnp.inf, s)
        p = jax.nn.softmax(s / hd ** 0.5, axis=-1)
        c = jnp.einsum("bhqk,bhkd->bhqd", p, v).transpose(0, 2, 1, 3).reshape(B, T, d_out)
        return c @ wo + bo

    expected = ref(x)
    assert out.shape == expected.shape and out.dtype == expected.dtype
    # bf16 MXU inputs => compare at bf16-level tolerance.
    max_err = float(jnp.max(jnp.abs(out - expected)))
    assert jnp.allclose(out, expected, atol=2e-2, rtol=2e-2), max_err
    print("KERNEL_OK")
</pallas_src>

<mosaic_0001>
module attributes {stable_mosaic.version = 11 : i64} {
  func.func @_out_proj_kernel(%arg0: i32, %arg1: memref<8x32xbf16, #tpu.memory_space<vmem>>, %arg2: memref<32x32xbf16, #tpu.memory_space<vmem>>, %arg3: memref<1x32xf32, #tpu.memory_space<vmem>>, %arg4: memref<8x32xf32, #tpu.memory_space<vmem>>) attributes {dimension_semantics = [#tpu.dimension_semantics<parallel>], iteration_bounds = array<i64: 4>, scalar_prefetch = 0 : i64, scratch_operands = 0 : i64, tpu.core_type = #tpu.core_type<tc>, window_params = [{transform_indices = @transform_0, window_bounds = array<i64: 8, 32>}, {pipeline_mode = #tpu.pipeline_mode<synchronous>, transform_indices = @transform_1, window_bounds = array<i64: 32, 32>}, {pipeline_mode = #tpu.pipeline_mode<synchronous>, transform_indices = @transform_2, window_bounds = array<i64: 1, 32>}, {transform_indices = @transform_3, window_bounds = array<i64: 8, 32>}]} {
    %c0 = arith.constant 0 : index
    %c0_0 = arith.constant 0 : index
    %0 = vector.load %arg1[%c0, %c0_0] : memref<8x32xbf16, #tpu.memory_space<vmem>>, vector<8x32xbf16>
    %c0_1 = arith.constant 0 : index
    %c0_2 = arith.constant 0 : index
    %1 = vector.load %arg2[%c0_1, %c0_2] : memref<32x32xbf16, #tpu.memory_space<vmem>>, vector<32x32xbf16>
    %cst = arith.constant dense<0.000000e+00> : vector<8x32xf32>
    %2 = tpu.matmul %0, %1, %cst {dimension_numbers = #tpu.dot_dimension_numbers<[1], [0], [0], [1], [0, 0, 1, 1], [], []>} : vector<8x32xbf16>, vector<32x32xbf16>, vector<8x32xf32> -> vector<8x32xf32>
    %c0_3 = arith.constant 0 : index
    %c0_4 = arith.constant 0 : index
    %3 = vector.load %arg3[%c0_3, %c0_4] : memref<1x32xf32, #tpu.memory_space<vmem>>, vector<1x32xf32>
    %4 = vector.broadcast %3 : vector<1x32xf32> to vector<8x32xf32>
    %5 = arith.addf %2, %4 : vector<8x32xf32>
    %c0_5 = arith.constant 0 : index
    %c0_6 = arith.constant 0 : index
    %6 = vector.load %arg4[%c0_5, %c0_6] : memref<8x32xf32, #tpu.memory_space<vmem>>, vector<8x32xf32>
    tpu.vector_store %arg4[%c0_5, %c0_6], %5 {strides = array<i32>} : memref<8x32xf32, #tpu.memory_space<vmem>>, vector<8x32xf32>,
    return
  }
  func.func @transform_0(%arg0: i32) -> (i32, i32) {
    %c0_i32 = arith.constant 0 : i32
    %c0_i32_0 = arith.constant 0 : i32
    return %arg0, %c0_i32 : i32, i32
  }
  func.func @transform_1(%arg0: i32) -> (i32, i32) {
    %c0_i32 = arith.constant 0 : i32
    %c0_i32_0 = arith.constant 0 : i32
    %c0_i32_1 = arith.constant 0 : i32
    return %c0_i32, %c0_i32_0 : i32, i32
  }
  func.func @transform_2(%arg0: i32) -> (i32, i32) {
    %c0_i32 = arith.constant 0 : i32
    %c0_i32_0 = arith.constant 0 : i32
    %c0_i32_1 = arith.constant 0 : i32
    return %c0_i32, %c0_i32_0 : i32, i32
  }
  func.func @transform_3(%arg0: i32) -> (i32, i32) {
    %c0_i32 = arith.constant 0 : i32
    %c0_i32_0 = arith.constant 0 : i32
    return %arg0, %c0_i32 : i32, i32
  }
}

module attributes {stable_mosaic.version = 11 : i64} {
  func.func @_qkv_proj_kernel(%arg0: i32, %arg1: memref<8x32xf32, #tpu.memory_space<vmem>>, %arg2: memref<32x96xbf16, #tpu.memory_space<vmem>>, %arg3: memref<8x32xbf16, #tpu.memory_space<vmem>>, %arg4: memref<8x32xbf16, #tpu.memory_space<vmem>>, %arg5: memref<8x32xbf16, #tpu.memory_space<vmem>>) attributes {dimension_semantics = [#tpu.dimension_semantics<parallel>], iteration_bounds = array<i64: 4>, scalar_prefetch = 0 : i64, scratch_operands = 0 : i64, tpu.core_type = #tpu.core_type<tc>, window_params = [{transform_indices = @transform_0, window_bounds = array<i64: 8, 32>}, {pipeline_mode = #tpu.pipeline_mode<synchronous>, transform_indices = @transform_1, window_bounds = array<i64: 32, 96>}, {transform_indices = @transform_2, window_bounds = array<i64: 8, 32>}, {transform_indices = @transform_3, window_bounds = array<i64: 8, 32>}, {transform_indices = @transform_4, window_bounds = array<i64: 8, 32>}]} {
    %c0 = arith.constant 0 : index
    %c0_0 = arith.constant 0 : index
    %0 = vector.load %arg1[%c0, %c0_0] : memref<8x32xf32, #tpu.memory_space<vmem>>, vector<8x32xf32>
    %1 = arith.truncf %0 : vector<8x32xf32> to vector<8x32xbf16>
    %c0_1 = arith.constant 0 : index
    %c0_2 = arith.constant 0 : index
    %2 = vector.load %arg2[%c0_1, %c0_2] : memref<32x96xbf16, #tpu.memory_space<vmem>>, vector<32x96xbf16>
    %cst = arith.constant dense<0.000000e+00> : vector<8x96xf32>
    %3 = tpu.matmul %1, %2, %cst {dimension_numbers = #tpu.dot_dimension_numbers<[1], [0], [0], [1], [0, 0, 1, 1], [], []>} : vector<8x32xbf16>, vector<32x96xbf16>, vector<8x96xf32> -> vector<8x96xf32>
    %4 = vector.extract_strided_slice %3 {offsets = [0, 0], sizes = [8, 32], strides = [1, 1]} : vector<8x96xf32> to vector<8x32xf32>
    %5 = arith.truncf %4 : vector<8x32xf32> to vector<8x32xbf16>
    %c0_3 = arith.constant 0 : index
    %c0_4 = arith.constant 0 : index
    %6 = vector.load %arg3[%c0_3, %c0_4] : memref<8x32xbf16, #tpu.memory_space<vmem>>, vector<8x32xbf16>
    tpu.vector_store %arg3[%c0_3, %c0_4], %5 {strides = array<i32>} : memref<8x32xbf16, #tpu.memory_space<vmem>>, vector<8x32xbf16>,
    %7 = vector.extract_strided_slice %3 {offsets = [0, 32], sizes = [8, 32], strides = [1, 1]} : vector<8x96xf32> to vector<8x32xf32>
    %8 = arith.truncf %7 : vector<8x32xf32> to vector<8x32xbf16>
    %c0_5 = arith.constant 0 : index
    %c0_6 = arith.constant 0 : index
    %9 = vector.load %arg4[%c0_5, %c0_6] : memref<8x32xbf16, #tpu.memory_space<vmem>>, vector<8x32xbf16>
    tpu.vector_store %arg4[%c0_5, %c0_6], %8 {strides = array<i32>} : memref<8x32xbf16, #tpu.memory_space<vmem>>, vector<8x32xbf16>,
    %10 = vector.extract_strided_slice %3 {offsets = [0, 64], sizes = [8, 32], strides = [1, 1]} : vector<8x96xf32> to vector<8x32xf32>
    %11 = arith.truncf %10 : vector<8x32xf32> to vector<8x32xbf16>
    %c0_7 = arith.constant 0 : index
    %c0_8 = arith.constant 0 : index
    %12 = vector.load %arg5[%c0_7, %c0_8] : memref<8x32xbf16, #tpu.memory_space<vmem>>, vector<8x32xbf16>
    tpu.vector_store %arg5[%c0_7, %c0_8], %11 {strides = array<i32>} : memref<8x32xbf16, #tpu.memory_space<vmem>>, vector<8x32xbf16>,
    return
  }
  func.func @transform_0(%arg0: i32) -> (i32, i32) {
    %c0_i32 = arith.constant 0 : i32
    %c0_i32_0 = arith.constant 0 : i32
    return %arg0, %c0_i32 : i32, i32
  }
  func.func @transform_1(%arg0: i32) -> (i32, i32) {
    %c0_i32 = arith.constant 0 : i32
    %c0_i32_0 = arith.constant 0 : i32
    %c0_i32_1 = arith.constant 0 : i32
    return %c0_i32, %c0_i32_0 : i32, i32
  }
  func.func @transform_2(%arg0: i32) -> (i32, i32) {
    %c0_i32 = arith.constant 0 : i32
    %c0_i32_0 = arith.constant 0 : i32
    return %arg0, %c0_i32 : i32, i32
  }
  func.func @transform_3(%arg0: i32) -> (i32, i32) {
    %c0_i32 = arith.constant 0 : i32
    %c0_i32_0 = arith.constant 0 : i32
    return %arg0, %c0_i32 : i32, i32
  }
  func.func @transform_4(%arg0: i32) -> (i32, i32) {
    %c0_i32 = arith.constant 0 : i32
    %c0_i32_0 = arith.constant 0 : i32
    return %arg0, %c0_i32 : i32, i32
  }
}

module attributes {stable_mosaic.version = 11 : i64} {
  func.func @_flash_attn_kernel(%arg0: i32, %arg1: i32, %arg2: i32, %arg3: memref<1x8x32xbf16, #tpu.memory_space<vmem>>, %arg4: memref<1x8x32xbf16, #tpu.memory_space<vmem>>, %arg5: memref<1x8x32xbf16, #tpu.memory_space<vmem>>, %arg6: memref<1x8x32xbf16, #tpu.memory_space<vmem>>, %arg7: memref<4x8x1xf32, #tpu.memory_space<vmem>>, %arg8: memref<4x8x1xf32, #tpu.memory_space<vmem>>, %arg9: memref<4x8x8xf32, #tpu.memory_space<vmem>>) attributes {dimension_semantics = [#tpu.dimension_semantics<parallel>, #tpu.dimension_semantics<parallel>, #tpu.dimension_semantics<arbitrary>], iteration_bounds = array<i64: 2, 2, 2>, scalar_prefetch = 0 : i64, scratch_operands = 3 : i64, tpu.core_type = #tpu.core_type<tc>, window_params = [{transform_indices = @transform_0, window_bounds = array<i64: 1, 8, 32>}, {transform_indices = @transform_1, window_bounds = array<i64: 1, 8, 32>}, {transform_indices = @transform_2, window_bounds = array<i64: 1, 8, 32>}, {transform_indices = @transform_3, window_bounds = array<i64: 1, 8, 32>}]} {
    %c0_i32 = arith.constant 0 : i32
    %0 = arith.cmpi eq, %arg2, %c0_i32 : i32
    %1 = arith.extui %0 : i1 to i32
    %c0_i32_0 = arith.constant 0 : i32
    %2 = arith.cmpi ne, %1, %c0_i32_0 : i32
    scf.if %2 {
      %cst = arith.constant -1.000000e+30 : f32
      %12 = vector.broadcast %cst : f32 to vector<4x8x1xf32>
      %c0 = arith.constant 0 : index
      %c0_4 = arith.constant 0 : index
      %c0_5 = arith.constant 0 : index
      %13 = vector.load %arg7[%c0, %c0_4, %c0_5] : memref<4x8x1xf32, #tpu.memory_space<vmem>>, vector<4x8x1xf32>
      tpu.vector_store %arg7[%c0, %c0_4, %c0_5], %12 {strides = array<i32>} : memref<4x8x1xf32, #tpu.memory_space<vmem>>, vector<4x8x1xf32>,
      %cst_6 = arith.constant 0.000000e+00 : f32
      %14 = vector.broadcast %cst_6 : f32 to vector<4x8x1xf32>
      %c0_7 = arith.constant 0 : index
      %c0_8 = arith.constant 0 : index
      %c0_9 = arith.constant 0 : index
      %15 = vector.load %arg8[%c0_7, %c0_8, %c0_9] : memref<4x8x1xf32, #tpu.memory_space<vmem>>, vector<4x8x1xf32>
      tpu.vector_store %arg8[%c0_7, %c0_8, %c0_9], %14 {strides = array<i32>} : memref<4x8x1xf32, #tpu.memory_space<vmem>>, vector<4x8x1xf32>,
      %cst_10 = arith.constant 0.000000e+00 : f32
      %16 = vector.broadcast %cst_10 : f32 to vector<4x8x8xf32>
      %c0_11 = arith.constant 0 : index
      %c0_12 = arith.constant 0 : index
      %c0_13 = arith.constant 0 : index
      %17 = vector.load %arg9[%c0_11, %c0_12, %c0_13] : memref<4x8x8xf32, #tpu.memory_space<vmem>>, vector<4x8x8xf32>
      tpu.vector_store %arg9[%c0_11, %c0_12, %c0_13], %16 {strides = array<i32>} : memref<4x8x8xf32, #tpu.memory_space<vmem>>, vector<4x8x8xf32>,
    } else {
    }
    %3 = arith.cmpi slt, %arg2, %arg1 : i32
    %4 = arith.extui %3 : i1 to i32
    %c0_i32_1 = arith.constant 0 : i32
    %5 = arith.cmpi ne, %4, %c0_i32_1 : i32
    scf.if %5 {
      %c0 = arith.constant 0 : index
      %c0_4 = arith.constant 0 : index
      %c0_5 = arith.constant 0 : index
      %12 = vector.load %arg3[%c0, %c0_4, %c0_5] : memref<1x8x32xbf16, #tpu.memory_space<vmem>>, vector<1x8x32xbf16>
      %13 = vector.shape_cast %12 : vector<1x8x32xbf16> to vector<8x32xbf16>
      %c0_6 = arith.constant 0 : index
      %c0_7 = arith.constant 0 : index
      %c0_8 = arith.constant 0 : index
      %14 = vector.load %arg4[%c0_6, %c0_7, %c0_8] : memref<1x8x32xbf16, #tpu.memory_space<vmem>>, vector<1x8x32xbf16>
      %15 = vector.shape_cast %14 : vector<1x8x32xbf16> to vector<8x32xbf16>
      %c0_9 = arith.constant 0 : index
      %c0_10 = arith.constant 0 : index
      %c0_11 = arith.constant 0 : index
      %16 = vector.load %arg5[%c0_9, %c0_10, %c0_11] : memref<1x8x32xbf16, #tpu.memory_space<vmem>>, vector<1x8x32xbf16>
      %17 = vector.shape_cast %16 : vector<1x8x32xbf16> to vector<8x32xbf16>
      %18 = vector.extract_strided_slice %13 {offsets = [0, 0], sizes = [8, 8], strides = [1, 1]} : vector<8x32xbf16> to vector<8x8xbf16>
      %19 = vector.extract_strided_slice %15 {offsets = [0, 0], sizes = [8, 8], strides = [1, 1]} : vector<8x32xbf16> to vector<8x8xbf16>
      %cst = arith.constant dense<0.000000e+00> : vector<8x8xf32>
      %20 = tpu.matmul %18, %19, %cst {dimension_numbers = #tpu.dot_dimension_numbers<[1], [1], [0], [0], [0, 0, 1, 0], [], []>} : vector<8x8xbf16>, vector<8x8xbf16>, vector<8x8xf32> -> vector<8x8xf32>
      %c0_12 = arith.constant 0 : index
      %c0_13 = arith.constant 0 : index
      %c0_14 = arith.constant 0 : index
      %21 = vector.load %arg7[%c0_12, %c0_13, %c0_14] : memref<4x8x1xf32, #tpu.memory_space<vmem>>, vector<1x8x1xf32>
      %22 = vector.shape_cast %21 : vector<1x8x1xf32> to vector<8x1xf32>
      %cst_15 = arith.constant dense<0xFF800000> : vector<8xf32>
      %23 = vector.multi_reduction <maximumf>, %20, %cst_15 [1] : vector<8x8xf32> to vector<8xf32>
      %24 = vector.shape_cast %23 : vector<8xf32> to vector<8x1xf32>
      %25 = arith.maximumf %22, %24 : vector<8x1xf32>
      %26 = arith.subf %22, %25 : vector<8x1xf32>
      %27 = math.exp %26 : vector<8x1xf32>
      %28 = vector.broadcast %25 : vector<8x1xf32> to vector<8x8xf32>
      %29 = arith.subf %20, %28 : vector<8x8xf32>
      %30 = math.exp %29 : vector<8x8xf32>
      %c0_16 = arith.constant 0 : index
      %c0_17 = arith.constant 0 : index
      %c0_18 = arith.constant 0 : index
      %31 = vector.load %arg8[%c0_16, %c0_17, %c0_18] : memref<4x8x1xf32, #tpu.memory_space<vmem>>, vector<1x8x1xf32>
      %32 = vector.shape_cast %31 : vector<1x8x1xf32> to vector<8x1xf32>
      %33 = arith.mulf %27, %32 : vector<8x1xf32>
      %cst_19 = arith.constant dense<0.000000e+00> : vector<8xf32>
      %34 = vector.multi_reduction <add>, %30, %cst_19 [1] : vector<8x8xf32> to vector<8xf32>
      %35 = vector.shape_cast %34 : vector<8xf32> to vector<8x1xf32>
      %36 = arith.addf %33, %35 : vector<8x1xf32>
      %c0_20 = arith.constant 0 : index
      %c0_21 = arith.constant 0 : index
      %c0_22 = arith.constant 0 : index
      %37 = vector.load %arg8[%c0_20, %c0_21, %c0_22] : memref<4x8x1xf32, #tpu.memory_space<vmem>>, vector<1x8x1xf32>
      %38 = vector.shape_cast %37 : vector<1x8x1xf32> to vector<8x1xf32>
      %39 = vector.shape_cast %36 : vector<8x1xf32> to vector<1x8x1xf32>
      tpu.vector_store %arg8[%c0_20, %c0_21, %c0_22], %39 {strides = array<i32>} : memref<4x8x1xf32, #tpu.memory_space<vmem>>, vector<1x8x1xf32>,
      %c0_23 = arith.constant 0 : index
      %c0_24 = arith.constant 0 : index
      %c0_25 = arith.constant 0 : index
      %40 = vector.load %arg9[%c0_23, %c0_24, %c0_25] : memref<4x8x8xf32, #tpu.memory_space<vmem>>, vector<1x8x8xf32>
      %41 = vector.shape_cast %40 : vector<1x8x8xf32> to vector<8x8xf32>
      %42 = vector.broadcast %27 : vector<8x1xf32> to vector<8x8xf32>
      %43 = arith.mulf %42, %41 : vector<8x8xf32>
      %44 = arith.truncf %30 : vector<8x8xf32> to vector<8x8xbf16>
      %45 = vector.extract_strided_slice %17 {offsets = [0, 0], sizes = [8, 8], strides = [1, 1]} : vector<8x32xbf16> to vector<8x8xbf16>
      %cst_26 = arith.constant dense<0.000000e+00> : vector<8x8xf32>
      %46 = tpu.matmul %44, %45, %cst_26 {dimension_numbers = #tpu.dot_dimension_numbers<[1], [0], [0], [1], [0, 0, 1, 1], [], []>} : vector<8x8xbf16>, vector<8x8xbf16>, vector<8x8xf32> -> vector<8x8xf32>
      %47 = arith.addf %43, %46 : vector<8x8xf32>
      %c0_27 = arith.constant 0 : index
      %c0_28 = arith.constant 0 : index
      %c0_29 = arith.constant 0 : index
      %48 = vector.load %arg9[%c0_27, %c0_28, %c0_29] : memref<4x8x8xf32, #tpu.memory_space<vmem>>, vector<1x8x8xf32>
      %49 = vector.shape_cast %48 : vector<1x8x8xf32> to vector<8x8xf32>
      %50 = vector.shape_cast %47 : vector<8x8xf32> to vector<1x8x8xf32>
      tpu.vector_store %arg9[%c0_27, %c0_28, %c0_29], %50 {strides = array<i32>} : memref<4x8x8xf32, #tpu.memory_space<vmem>>, vector<1x8x8xf32>,
      %c0_30 = arith.constant 0 : index
      %c0_31 = arith.constant 0 : index
      %c0_32 = arith.constant 0 : index
      %51 = vector.load %arg7[%c0_30, %c0_31, %c0_32] : memref<4x8x1xf32, #tpu.memory_space<vmem>>, vector<1x8x1xf32>
      %52 = vector.shape_cast %51 : vector<1x8x1xf32> to vector<8x1xf32>
      %53 = vector.shape_cast %25 : vector<8x1xf32> to vector<1x8x1xf32>
      tpu.vector_store %arg7[%c0_30, %c0_31, %c0_32], %53 {strides = array<i32>} : memref<4x8x1xf32, #tpu.memory_space<vmem>>, vector<1x8x1xf32>,
      %54 = vector.extract_strided_slice %13 {offsets = [0, 8], sizes = [8, 8], strides = [1, 1]} : vector<8x32xbf16> to vector<8x8xbf16>
      %55 = vector.extract_strided_slice %15 {offsets = [0, 8], sizes = [8, 8], strides = [1, 1]} : vector<8x32xbf16> to vector<8x8xbf16>
      %cst_33 = arith.constant dense<0.000000e+00> : vector<8x8xf32>
      %56 = tpu.matmul %54, %55, %cst_33 {dimension_numbers = #tpu.dot_dimension_numbers<[1], [1], [0], [0], [0, 0, 1, 0], [], []>} : vector<8x8xbf16>, vector<8x8xbf16>, vector<8x8xf32> -> vector<8x8xf32>
      %c1 = arith.constant 1 : index
      %c0_34 = arith.constant 0 : index
      %c0_35 = arith.constant 0 : index
      %57 = vector.load %arg7[%c1, %c0_34, %c0_35] : memref<4x8x1xf32, #tpu.memory_space<vmem>>, vector<1x8x1xf32>
      %58 = vector.shape_cast %57 : vector<1x8x1xf32> to vector<8x1xf32>
      %cst_36 = arith.constant dense<0xFF800000> : vector<8xf32>
      %59 = vector.multi_reduction <maximumf>, %56, %cst_36 [1] : vector<8x8xf32> to vector<8xf32>
      %60 = vector.shape_cast %59 : vector<8xf32> to vector<8x1xf32>
      %61 = arith.maximumf %58, %60 : vector<8x1xf32>
      %62 = arith.subf %58, %61 : vector<8x1xf32>
      %63 = math.exp %62 : vector<8x1xf32>
      %64 = vector.broadcast %61 : vector<8x1xf32> to vector<8x8xf32>
      %65 = arith.subf %56, %64 : vector<8x8xf32>
      %66 = math.exp %65 : vector<8x8xf32>
      %c1_37 = arith.constant 1 : index
      %c0_38 = arith.constant 0 : index
      %c0_39 = arith.constant 0 : index
      %67 = vector.load %arg8[%c1_37, %c0_38, %c0_39] : memref<4x8x1xf32, #tpu.memory_space<vmem>>, vector<1x8x1xf32>
      %68 = vector.shape_cast %67 : vector<1x8x1xf32> to vector<8x1xf32>
      %69 = arith.mulf %63, %68 : vector<8x1xf32>
      %cst_40 = arith.constant dense<0.000000e+00> : vector<8xf32>
      %70 = vector.multi_reduction <add>, %66, %cst_40 [1] : vector<8x8xf32> to vector<8xf32>
      %71 = vector.shape_cast %70 : vector<8xf32> to vector<8x1xf32>
      %72 = arith.addf %69, %71 : vector<8x1xf32>
      %c1_41 = arith.constant 1 : index
      %c0_42 = arith.constant 0 : index
      %c0_43 = arith.constant 0 : index
      %73 = vector.load %arg8[%c1_41, %c0_42, %c0_43] : memref<4x8x1xf32, #tpu.memory_space<vmem>>, vector<1x8x1xf32>
      %74 = vector.shape_cast %73 : vector<1x8x1xf32> to vector<8x1xf32>
      %75 = vector.shape_cast %72 : vector<8x1xf32> to vector<1x8x1xf32>
      tpu.vector_store %arg8[%c1_41, %c0_42, %c0_43], %75 {strides = array<i32>} : memref<4x8x1xf32, #tpu.memory_space<vmem>>, vector<1x8x1xf32>,
      %c1_44 = arith.constant 1 : index
      %c0_45 = arith.constant 0 : index
      %c0_46 = arith.constant 0 : index
      %76 = vector.load %arg9[%c1_44, %c0_45, %c0_46] : memref<4x8x8xf32, #tpu.memory_space<vmem>>, vector<1x8x8xf32>
      %77 = vector.shape_cast %76 : vector<1x8x8xf32> to vector<8x8xf32>
      %78 = vector.broadcast %63 : vector<8x1xf32> to vector<8x8xf32>
      %79 = arith.mulf %78, %77 : vector<8x8xf32>
      %80 = arith.truncf %66 : vector<8x8xf32> to vector<8x8xbf16>
      %81 = vector.extract_strided_slice %17 {offsets = [0, 8], sizes = [8, 8], strides = [1, 1]} : vector<8x32xbf16> to vector<8x8xbf16>
      %cst_47 = arith.constant dense<0.000000e+00> : vector<8x8xf32>
      %82 = tpu.matmul %80, %81, %cst_47 {dimension_numbers = #tpu.dot_dimension_numbers<[1], [0], [0], [1], [0, 0, 1, 1], [], []>} : vector<8x8xbf16>, vector<8x8xbf16>, vector<8x8xf32> -> vector<8x8xf32>
      %83 = arith.addf %79, %82 : vector<8x8xf32>
      %c1_48 = arith.constant 1 : index
      %c0_49 = arith.constant 0 : index
      %c0_50 = arith.constant 0 : index
      %84 = vector.load %arg9[%c1_48, %c0_49, %c0_50] : memref<4x8x8xf32, #tpu.memory_space<vmem>>, vector<1x8x8xf32>
      %85 = vector.shape_cast %84 : vector<1x8x8xf32> to vector<8x8xf32>
      %86 = vector.shape_cast %83 : vector<8x8xf32> to vector<1x8x8xf32>
      tpu.vector_store %arg9[%c1_48, %c0_49, %c0_50], %86 {strides = array<i32>} : memref<4x8x8xf32, #tpu.memory_space<vmem>>, vector<1x8x8xf32>,
      %c1_51 = arith.constant 1 : index
      %c0_52 = arith.constant 0 : index
      %c0_53 = arith.constant 0 : index
      %87 = vector.load %arg7[%c1_51, %c0_52, %c0_53] : memref<4x8x1xf32, #tpu.memory_space<vmem>>, vector<1x8x1xf32>
      %88 = vector.shape_cast %87 : vector<1x8x1xf32> to vector<8x1xf32>
      %89 = vector.shape_cast %61 : vector<8x1xf32> to vector<1x8x1xf32>
      tpu.vector_store %arg7[%c1_51, %c0_52, %c0_53], %89 {strides = array<i32>} : memref<4x8x1xf32, #tpu.memory_space<vmem>>, vector<1x8x1xf32>,
      %90 = vector.extract_strided_slice %13 {offsets = [0, 16], sizes = [8, 8], strides = [1, 1]} : vector<8x32xbf16> to vector<8x8xbf16>
      %91 = vector.extract_strided_slice %15 {offsets = [0, 16], sizes = [8, 8], strides = [1, 1]} : vector<8x32xbf16> to vector<8x8xbf16>
      %cst_54 = arith.constant dense<0.000000e+00> : vector<8x8xf32>
      %92 = tpu.matmul %90, %91, %cst_54 {dimension_numbers = #tpu.dot_dimension_numbers<[1], [1], [0], [0], [0, 0, 1, 0], [], []>} : vector<8x8xbf16>, vector<8x8xbf16>, vector<8x8xf32> -> vector<8x8xf32>
      %c2 = arith.constant 2 : index
      %c0_55 = arith.constant 0 : index
      %c0_56 = arith.constant 0 : index
      %93 = vector.load %arg7[%c2, %c0_55, %c0_56] : memref<4x8x1xf32, #tpu.memory_space<vmem>>, vector<1x8x1xf32>
      %94 = vector.shape_cast %93 : vector<1x8x1xf32> to vector<8x1xf32>
      %cst_57 = arith.constant dense<0xFF800000> : vector<8xf32>
      %95 = vector.multi_reduction <maximumf>, %92, %cst_57 [1] : vector<8x8xf32> to vector<8xf32>
      %96 = vector.shape_cast %95 : vector<8xf32> to vector<8x1xf32>
      %97 = arith.maximumf %94, %96 : vector<8x1xf32>
      %98 = arith.subf %94, %97 : vector<8x1xf32>
      %99 = math.exp %98 : vector<8x1xf32>
      %100 = vector.broadcast %97 : vector<8x1xf32> to vector<8x8xf32>
      %101 = arith.subf %92, %100 : vector<8x8xf32>
      %102 = math.exp %101 : vector<8x8xf32>
      %c2_58 = arith.constant 2 : index
      %c0_59 = arith.constant 0 : index
      %c0_60 = arith.constant 0 : index
      %103 = vector.load %arg8[%c2_58, %c0_59, %c0_60] : memref<4x8x1xf32, #tpu.memory_space<vmem>>, vector<1x8x1xf32>
      %104 = vector.shape_cast %103 : vector<1x8x1xf32> to vector<8x1xf32>
      %105 = arith.mulf %99, %104 : vector<8x1xf32>
      %cst_61 = arith.constant dense<0.000000e+00> : vector<8xf32>
      %106 = vector.multi_reduction <add>, %102, %cst_61 [1] : vector<8x8xf32> to vector<8xf32>
      %107 = vector.shape_cast %106 : vector<8xf32> to vector<8x1xf32>
      %108 = arith.addf %105, %107 : vector<8x1xf32>
      %c2_62 = arith.constant 2 : index
      %c0_63 = arith.constant 0 : index
      %c0_64 = arith.constant 0 : index
      %109 = vector.load %arg8[%c2_62, %c0_63, %c0_64] : memref<4x8x1xf32, #tpu.memory_space<vmem>>, vector<1x8x1xf32>
      %110 = vector.shape_cast %109 : vector<1x8x1xf32> to vector<8x1xf32>
      %111 = vector.shape_cast %108 : vector<8x1xf32> to vector<1x8x1xf32>
      tpu.vector_store %arg8[%c2_62, %c0_63, %c0_64], %111 {strides = array<i32>} : memref<4x8x1xf32, #tpu.memory_space<vmem>>, vector<1x8x1xf32>,
      %c2_65 = arith.constant 2 : index
      %c0_66 = arith.constant 0 : index
      %c0_67 = arith.constant 0 : index
      %112 = vector.load %arg9[%c2_65, %c0_66, %c0_67] : memref<4x8x8xf32, #tpu.memory_space<vmem>>, vector<1x8x8xf32>
      %113 = vector.shape_cast %112 : vector<1x8x8xf32> to vector<8x8xf32>
      %114 = vector.broadcast %99 : vector<8x1xf32> to vector<8x8xf32>
      %115 = arith.mulf %114, %113 : vector<8x8xf32>
      %116 = arith.truncf %102 : vector<8x8xf32> to vector<8x8xbf16>
      %117 = vector.extract_strided_slice %17 {offsets = [0, 16], sizes = [8, 8], strides = [1, 1]} : vector<8x32xbf16> to vector<8x8xbf16>
      %cst_68 = arith.constant dense<0.000000e+00> : vector<8x8xf32>
      %118 = tpu.matmul %116, %117, %cst_68 {dimension_numbers = #tpu.dot_dimension_numbers<[1], [0], [0], [1], [0, 0, 1, 1], [], []>} : vector<8x8xbf16>, vector<8x8xbf16>, vector<8x8xf32> -> vector<8x8xf32>
      %119 = arith.addf %115, %118 : vector<8x8xf32>
      %c2_69 = arith.constant 2 : index
      %c0_70 = arith.constant 0 : index
      %c0_71 = arith.constant 0 : index
      %120 = vector.load %arg9[%c2_69, %c0_70, %c0_71] : memref<4x8x8xf32, #tpu.memory_space<vmem>>, vector<1x8x8xf32>
      %121 = vector.shape_cast %120 : vector<1x8x8xf32> to vector<8x8xf32>
      %122 = vector.shape_cast %119 : vector<8x8xf32> to vector<1x8x8xf32>
      tpu.vector_store %arg9[%c2_69, %c0_70, %c0_71], %122 {strides = array<i32>} : memref<4x8x8xf32, #tpu.memory_space<vmem>>, vector<1x8x8xf32>,
      %c2_72 = arith.constant 2 : index
      %c0_73 = arith.constant 0 : index
      %c0_74 = arith.constant 0 : index
      %123 = vector.load %arg7[%c2_72, %c0_73, %c0_74] : memref<4x8x1xf32, #tpu.memory_space<vmem>>, vector<1x8x1xf32>
      %124 = vector.shape_cast %123 : vector<1x8x1xf32> to vector<8x1xf32>
      %125 = vector.shape_cast %97 : vector<8x1xf32> to vector<1x8x1xf32>
      tpu.vector_store %arg7[%c2_72, %c0_73, %c0_74], %125 {strides = array<i32>} : memref<4x8x1xf32, #tpu.memory_space<vmem>>, vector<1x8x1xf32>,
      %126 = vector.extract_strided_slice %13 {offsets = [0, 24], sizes = [8, 8], strides = [1, 1]} : vector<8x32xbf16> to vector<8x8xbf16>
      %127 = vector.extract_strided_slice %15 {offsets = [0, 24], sizes = [8, 8], strides = [1, 1]} : vector<8x32xbf16> to vector<8x8xbf16>
      %cst_75 = arith.constant dense<0.000000e+00> : vector<8x8xf32>
      %128 = tpu.matmul %126, %127, %cst_75 {dimension_numbers = #tpu.dot_dimension_numbers<[1], [1], [0], [0], [0, 0, 1, 0], [], []>} : vector<8x8xbf16>, vector<8x8xbf16>, vector<8x8xf32> -> vector<8x8xf32>
      %c3 = arith.constant 3 : index
      %c0_76 = arith.constant 0 : index
      %c0_77 = arith.constant 0 : index
      %129 = vector.load %arg7[%c3, %c0_76, %c0_77] : memref<4x8x1xf32, #tpu.memory_space<vmem>>, vector<1x8x1xf32>
      %130 = vector.shape_cast %129 : vector<1x8x1xf32> to vector<8x1xf32>
      %cst_78 = arith.constant dense<0xFF800000> : vector<8xf32>
      %131 = vector.multi_reduction <maximumf>, %128, %cst_78 [1] : vector<8x8xf32> to vector<8xf32>
      %132 = vector.shape_cast %131 : vector<8xf32> to vector<8x1xf32>
      %133 = arith.maximumf %130, %132 : vector<8x1xf32>
      %134 = arith.subf %130, %133 : vector<8x1xf32>
      %135 = math.exp %134 : vector<8x1xf32>
      %136 = vector.broadcast %133 : vector<8x1xf32> to vector<8x8xf32>
      %137 = arith.subf %128, %136 : vector<8x8xf32>
      %138 = math.exp %137 : vector<8x8xf32>
      %c3_79 = arith.constant 3 : index
      %c0_80 = arith.constant 0 : index
      %c0_81 = arith.constant 0 : index
      %139 = vector.load %arg8[%c3_79, %c0_80, %c0_81] : memref<4x8x1xf32, #tpu.memory_space<vmem>>, vector<1x8x1xf32>
      %140 = vector.shape_cast %139 : vector<1x8x1xf32> to vector<8x1xf32>
      %141 = arith.mulf %135, %140 : vector<8x1xf32>
      %cst_82 = arith.constant dense<0.000000e+00> : vector<8xf32>
      %142 = vector.multi_reduction <add>, %138, %cst_82 [1] : vector<8x8xf32> to vector<8xf32>
      %143 = vector.shape_cast %142 : vector<8xf32> to vector<8x1xf32>
      %144 = arith.addf %141, %143 : vector<8x1xf32>
      %c3_83 = arith.constant 3 : index
      %c0_84 = arith.constant 0 : index
      %c0_85 = arith.constant 0 : index
      %145 = vector.load %arg8[%c3_83, %c0_84, %c0_85] : memref<4x8x1xf32, #tpu.memory_space<vmem>>, vector<1x8x1xf32>
      %146 = vector.shape_cast %145 : vector<1x8x1xf32> to vector<8x1xf32>
      %147 = vector.shape_cast %144 : vector<8x1xf32> to vector<1x8x1xf32>
      tpu.vector_store %arg8[%c3_83, %c0_84, %c0_85], %147 {strides = array<i32>} : memref<4x8x1xf32, #tpu.memory_space<vmem>>, vector<1x8x1xf32>,
      %c3_86 = arith.constant 3 : index
      %c0_87 = arith.constant 0 : index
      %c0_88 = arith.constant 0 : index
      %148 = vector.load %arg9[%c3_86, %c0_87, %c0_88] : memref<4x8x8xf32, #tpu.memory_space<vmem>>, vector<1x8x8xf32>
      %149 = vector.shape_cast %148 : vector<1x8x8xf32> to vector<8x8xf32>
      %150 = vector.broadcast %135 : vector<8x1xf32> to vector<8x8xf32>
      %151 = arith.mulf %150, %149 : vector<8x8xf32>
      %152 = arith.truncf %138 : vector<8x8xf32> to vector<8x8xbf16>
      %153 = vector.extract_strided_slice %17 {offsets = [0, 24], sizes = [8, 8], strides = [1, 1]} : vector<8x32xbf16> to vector<8x8xbf16>
      %cst_89 = arith.constant dense<0.000000e+00> : vector<8x8xf32>
      %154 = tpu.matmul %152, %153, %cst_89 {dimension_numbers = #tpu.dot_dimension_numbers<[1], [0], [0], [1], [0, 0, 1, 1], [], []>} : vector<8x8xbf16>, vector<8x8xbf16>, vector<8x8xf32> -> vector<8x8xf32>
      %155 = arith.addf %151, %154 : vector<8x8xf32>
      %c3_90 = arith.constant 3 : index
      %c0_91 = arith.constant 0 : index
      %c0_92 = arith.constant 0 : index
      %156 = vector.load %arg9[%c3_90, %c0_91, %c0_92] : memref<4x8x8xf32, #tpu.memory_space<vmem>>, vector<1x8x8xf32>
      %157 = vector.shape_cast %156 : vector<1x8x8xf32> to vector<8x8xf32>
      %158 = vector.shape_cast %155 : vector<8x8xf32> to vector<1x8x8xf32>
      tpu.vector_store %arg9[%c3_90, %c0_91, %c0_92], %158 {strides = array<i32>} : memref<4x8x8xf32, #tpu.memory_space<vmem>>, vector<1x8x8xf32>,
      %c3_93 = arith.constant 3 : index
      %c0_94 = arith.constant 0 : index
      %c0_95 = arith.constant 0 : index
      %159 = vector.load %arg7[%c3_93, %c0_94, %c0_95] : memref<4x8x1xf32, #tpu.memory_space<vmem>>, vector<1x8x1xf32>
      %160 = vector.shape_cast %159 : vector<1x8x1xf32> to vector<8x1xf32>
      %161 = vector.shape_cast %133 : vector<8x1xf32> to vector<1x8x1xf32>
      tpu.vector_store %arg7[%c3_93, %c0_94, %c0_95], %161 {strides = array<i32>} : memref<4x8x1xf32, #tpu.memory_space<vmem>>, vector<1x8x1xf32>,
    } else {
    }
    %6 = arith.cmpi eq, %arg2, %arg1 : i32
    %7 = arith.extui %6 : i1 to i32
    %c0_i32_2 = arith.constant 0 : i32
    %8 = arith.cmpi ne, %7, %c0_i32_2 : i32
    scf.if %8 {
      %c0 = arith.constant 0 : index
      %c0_4 = arith.constant 0 : index
      %c0_5 = arith.constant 0 : index
      %12 = vector.load %arg3[%c0, %c0_4, %c0_5] : memref<1x8x32xbf16, #tpu.memory_space<vmem>>, vector<1x8x32xbf16>
      %13 = vector.shape_cast %12 : vector<1x8x32xbf16> to vector<8x32xbf16>
      %c0_6 = arith.constant 0 : index
      %c0_7 = arith.constant 0 : index
      %c0_8 = arith.constant 0 : index
      %14 = vector.load %arg4[%c0_6, %c0_7, %c0_8] : memref<1x8x32xbf16, #tpu.memory_space<vmem>>, vector<1x8x32xbf16>
      %15 = vector.shape_cast %14 : vector<1x8x32xbf16> to vector<8x32xbf16>
      %c0_9 = arith.constant 0 : index
      %c0_10 = arith.constant 0 : index
      %c0_11 = arith.constant 0 : index
      %16 = vector.load %arg5[%c0_9, %c0_10, %c0_11] : memref<1x8x32xbf16, #tpu.memory_space<vmem>>, vector<1x8x32xbf16>
      %17 = vector.shape_cast %16 : vector<1x8x32xbf16> to vector<8x32xbf16>
      %18 = tpu.iota {dimensions = array<i32: 0>} : vector<8x8xi32>
      %19 = tpu.iota {dimensions = array<i32: 1>} : vector<8x8xi32>
      %20 = arith.cmpi sle, %19, %18 : vector<8x8xi32>
      %cst = arith.constant 0.000000e+00 : f32
      %cst_12 = arith.constant -1.000000e+30 : f32
      %21 = vector.broadcast %cst : f32 to vector<8x8xf32>
      %22 = vector.broadcast %cst_12 : f32 to vector<8x8xf32>
      %23 = arith.select %20, %21, %22 : vector<8x8xi1>, vector<8x8xf32>
      %24 = vector.extract_strided_slice %13 {offsets = [0, 0], sizes = [8, 8], strides = [1, 1]} : vector<8x32xbf16> to vector<8x8xbf16>
      %25 = vector.extract_strided_slice %15 {offsets = [0, 0], sizes = [8, 8], strides = [1, 1]} : vector<8x32xbf16> to vector<8x8xbf16>
      %cst_13 = arith.constant dense<0.000000e+00> : vector<8x8xf32>
      %26 = tpu.matmul %24, %25, %cst_13 {dimension_numbers = #tpu.dot_dimension_numbers<[1], [1], [0], [0], [0, 0, 1, 0], [], []>} : vector<8x8xbf16>, vector<8x8xbf16>, vector<8x8xf32> -> vector<8x8xf32>
      %27 = arith.addf %26, %23 : vector<8x8xf32>
      %c0_14 = arith.constant 0 : index
      %c0_15 = arith.constant 0 : index
      %c0_16 = arith.constant 0 : index
      %28 = vector.load %arg7[%c0_14, %c0_15, %c0_16] : memref<4x8x1xf32, #tpu.memory_space<vmem>>, vector<1x8x1xf32>
      %29 = vector.shape_cast %28 : vector<1x8x1xf32> to vector<8x1xf32>
      %cst_17 = arith.constant dense<0xFF800000> : vector<8xf32>
      %30 = vector.multi_reduction <maximumf>, %27, %cst_17 [1] : vector<8x8xf32> to vector<8xf32>
      %31 = vector.shape_cast %30 : vector<8xf32> to vector<8x1xf32>
      %32 = arith.maximumf %29, %31 : vector<8x1xf32>
      %33 = arith.subf %29, %32 : vector<8x1xf32>
      %34 = math.exp %33 : vector<8x1xf32>
      %35 = vector.broadcast %32 : vector<8x1xf32> to vector<8x8xf32>
      %36 = arith.subf %27, %35 : vector<8x8xf32>
      %37 = math.exp %36 : vector<8x8xf32>
      %c0_18 = arith.constant 0 : index
      %c0_19 = arith.constant 0 : index
      %c0_20 = arith.constant 0 : index
      %38 = vector.load %arg8[%c0_18, %c0_19, %c0_20] : memref<4x8x1xf32, #tpu.memory_space<vmem>>, vector<1x8x1xf32>
      %39 = vector.shape_cast %38 : vector<1x8x1xf32> to vector<8x1xf32>
      %40 = arith.mulf %34, %39 : vector<8x1xf32>
      %cst_21 = arith.constant dense<0.000000e+00> : vector<8xf32>
      %41 = vector.multi_reduction <add>, %37, %cst_21 [1] : vector<8x8xf32> to vector<8xf32>
      %42 = vector.shape_cast %41 : vector<8xf32> to vector<8x1xf32>
      %43 = arith.addf %40, %42 : vector<8x1xf32>
      %c0_22 = arith.constant 0 : index
      %c0_23 = arith.constant 0 : index
      %c0_24 = arith.constant 0 : index
      %44 = vector.load %arg8[%c0_22, %c0_23, %c0_24] : memref<4x8x1xf32, #tpu.memory_space<vmem>>, vector<1x8x1xf32>
      %45 = vector.shape_cast %44 : vector<1x8x1xf32> to vector<8x1xf32>
      %46 = vector.shape_cast %43 : vector<8x1xf32> to vector<1x8x1xf32>
      tpu.vector_store %arg8[%c0_22, %c0_23, %c0_24], %46 {strides = array<i32>} : memref<4x8x1xf32, #tpu.memory_space<vmem>>, vector<1x8x1xf32>,
      %c0_25 = arith.constant 0 : index
      %c0_26 = arith.constant 0 : index
      %c0_27 = arith.constant 0 : index
      %47 = vector.load %arg9[%c0_25, %c0_26, %c0_27] : memref<4x8x8xf32, #tpu.memory_space<vmem>>, vector<1x8x8xf32>
      %48 = vector.shape_cast %47 : vector<1x8x8xf32> to vector<8x8xf32>
      %49 = vector.broadcast %34 : vector<8x1xf32> to vector<8x8xf32>
      %50 = arith.mulf %49, %48 : vector<8x8xf32>
      %51 = arith.truncf %37 : vector<8x8xf32> to vector<8x8xbf16>
      %52 = vector.extract_strided_slice %17 {offsets = [0, 0], sizes = [8, 8], strides = [1, 1]} : vector<8x32xbf16> to vector<8x8xbf16>
      %cst_28 = arith.constant dense<0.000000e+00> : vector<8x8xf32>
      %53 = tpu.matmul %51, %52, %cst_28 {dimension_numbers = #tpu.dot_dimension_numbers<[1], [0], [0], [1], [0, 0, 1, 1], [], []>} : vector<8x8xbf16>, vector<8x8xbf16>, vector<8x8xf32> -> vector<8x8xf32>
      %54 = arith.addf %50, %53 : vector<8x8xf32>
      %c0_29 = arith.constant 0 : index
      %c0_30 = arith.constant 0 : index
      %c0_31 = arith.constant 0 : index
      %55 = vector.load %arg9[%c0_29, %c0_30, %c0_31] : memref<4x8x8xf32, #tpu.memory_space<vmem>>, vector<1x8x8xf32>
      %56 = vector.shape_cast %55 : vector<1x8x8xf32> to vector<8x8xf32>
      %57 = vector.shape_cast %54 : vector<8x8xf32> to vector<1x8x8xf32>
      tpu.vector_store %arg9[%c0_29, %c0_30, %c0_31], %57 {strides = array<i32>} : memref<4x8x8xf32, #tpu.memory_space<vmem>>, vector<1x8x8xf32>,
      %c0_32 = arith.constant 0 : index
      %c0_33 = arith.constant 0 : index
      %c0_34 = arith.constant 0 : index
      %58 = vector.load %arg7[%c0_32, %c0_33, %c0_34] : memref<4x8x1xf32, #tpu.memory_space<vmem>>, vector<1x8x1xf32>
      %59 = vector.shape_cast %58 : vector<1x8x1xf32> to vector<8x1xf32>
      %60 = vector.shape_cast %32 : vector<8x1xf32> to vector<1x8x1xf32>
      tpu.vector_store %arg7[%c0_32, %c0_33, %c0_34], %60 {strides = array<i32>} : memref<4x8x1xf32, #tpu.memory_space<vmem>>, vector<1x8x1xf32>,
      %61 = vector.extract_strided_slice %13 {offsets = [0, 8], sizes = [8, 8], strides = [1, 1]} : vector<8x32xbf16> to vector<8x8xbf16>
      %62 = vector.extract_strided_slice %15 {offsets = [0, 8], sizes = [8, 8], strides = [1, 1]} : vector<8x32xbf16> to vector<8x8xbf16>
      %cst_35 = arith.constant dense<0.000000e+00> : vector<8x8xf32>
      %63 = tpu.matmul %61, %62, %cst_35 {dimension_numbers = #tpu.dot_dimension_numbers<[1], [1], [0], [0], [0, 0, 1, 0], [], []>} : vector<8x8xbf16>, vector<8x8xbf16>, vector<8x8xf32> -> vector<8x8xf32>
      %64 = arith.addf %63, %23 : vector<8x8xf32>
      %c1 = arith.constant 1 : index
      %c0_36 = arith.constant 0 : index
      %c0_37 = arith.constant 0 : index
      %65 = vector.load %arg7[%c1, %c0_36, %c0_37] : memref<4x8x1xf32, #tpu.memory_space<vmem>>, vector<1x8x1xf32>
      %66 = vector.shape_cast %65 : vector<1x8x1xf32> to vector<8x1xf32>
      %cst_38 = arith.constant dense<0xFF800000> : vector<8xf32>
      %67 = vector.multi_reduction <maximumf>, %64, %cst_38 [1] : vector<8x8xf32> to vector<8xf32>
      %68 = vector.shape_cast %67 : vector<8xf32> to vector<8x1xf32>
      %69 = arith.maximumf %66, %68 : vector<8x1xf32>
      %70 = arith.subf %66, %69 : vector<8x1xf32>
      %71 = math.exp %70 : vector<8x1xf32>
      %72 = vector.broadcast %69 : vector<8x1xf32> to vector<8x8xf32>
      %73 = arith.subf %64, %72 : vector<8x8xf32>
      %74 = math.exp %73 : vector<8x8xf32>
      %c1_39 = arith.constant 1 : index
      %c0_40 = arith.constant 0 : index
      %c0_41 = arith.constant 0 : index
      %75 = vector.load %arg8[%c1_39, %c0_40, %c0_41] : memref<4x8x1xf32, #tpu.memory_space<vmem>>, vector<1x8x1xf32>
      %76 = vector.shape_cast %75 : vector<1x8x1xf32> to vector<8x1xf32>
      %77 = arith.mulf %71, %76 : vector<8x1xf32>
      %cst_42 = arith.constant dense<0.000000e+00> : vector<8xf32>
      %78 = vector.multi_reduction <add>, %74, %cst_42 [1] : vector<8x8xf32> to vector<8xf32>
      %79 = vector.shape_cast %78 : vector<8xf32> to vector<8x1xf32>
      %80 = arith.addf %77, %79 : vector<8x1xf32>
      %c1_43 = arith.constant 1 : index
      %c0_44 = arith.constant 0 : index
      %c0_45 = arith.constant 0 : index
      %81 = vector.load %arg8[%c1_43, %c0_44, %c0_45] : memref<4x8x1xf32, #tpu.memory_space<vmem>>, vector<1x8x1xf32>
      %82 = vector.shape_cast %81 : vector<1x8x1xf32> to vector<8x1xf32>
      %83 = vector.shape_cast %80 : vector<8x1xf32> to vector<1x8x1xf32>
      tpu.vector_store %arg8[%c1_43, %c0_44, %c0_45], %83 {strides = array<i32>} : memref<4x8x1xf32, #tpu.memory_space<vmem>>, vector<1x8x1xf32>,
      %c1_46 = arith.constant 1 : index
      %c0_47 = arith.constant 0 : index
      %c0_48 = arith.constant 0 : index
      %84 = vector.load %arg9[%c1_46, %c0_47, %c0_48] : memref<4x8x8xf32, #tpu.memory_space<vmem>>, vector<1x8x8xf32>
      %85 = vector.shape_cast %84 : vector<1x8x8xf32> to vector<8x8xf32>
      %86 = vector.broadcast %71 : vector<8x1xf32> to vector<8x8xf32>
      %87 = arith.mulf %86, %85 : vector<8x8xf32>
      %88 = arith.truncf %74 : vector<8x8xf32> to vector<8x8xbf16>
      %89 = vector.extract_strided_slice %17 {offsets = [0, 8], sizes = [8, 8], strides = [1, 1]} : vector<8x32xbf16> to vector<8x8xbf16>
      %cst_49 = arith.constant dense<0.000000e+00> : vector<8x8xf32>
      %90 = tpu.matmul %88, %89, %cst_49 {dimension_numbers = #tpu.dot_dimension_numbers<[1], [0], [0], [1], [0, 0, 1, 1], [], []>} : vector<8x8xbf16>, vector<8x8xbf16>, vector<8x8xf32> -> vector<8x8xf32>
      %91 = arith.addf %87, %90 : vector<8x8xf32>
      %c1_50 = arith.constant 1 : index
      %c0_51 = arith.constant 0 : index
      %c0_52 = arith.constant 0 : index
      %92 = vector.load %arg9[%c1_50, %c0_51, %c0_52] : memref<4x8x8xf32, #tpu.memory_space<vmem>>, vector<1x8x8xf32>
      %93 = vector.shape_cast %92 : vector<1x8x8xf32> to vector<8x8xf32>
      %94 = vector.shape_cast %91 : vector<8x8xf32> to vector<1x8x8xf32>
      tpu.vector_store %arg9[%c1_50, %c0_51, %c0_52], %94 {strides = array<i32>} : memref<4x8x8xf32, #tpu.memory_space<vmem>>, vector<1x8x8xf32>,
      %c1_53 = arith.constant 1 : index
      %c0_54 = arith.constant 0 : index
      %c0_55 = arith.constant 0 : index
      %95 = vector.load %arg7[%c1_53, %c0_54, %c0_55] : memref<4x8x1xf32, #tpu.memory_space<vmem>>, vector<1x8x1xf32>
      %96 = vector.shape_cast %95 : vector<1x8x1xf32> to vector<8x1xf32>
      %97 = vector.shape_cast %69 : vector<8x1xf32> to vector<1x8x1xf32>
      tpu.vector_store %arg7[%c1_53, %c0_54, %c0_55], %97 {strides = array<i32>} : memref<4x8x1xf32, #tpu.memory_space<vmem>>, vector<1x8x1xf32>,
      %98 = vector.extract_strided_slice %13 {offsets = [0, 16], sizes = [8, 8], strides = [1, 1]} : vector<8x32xbf16> to vector<8x8xbf16>
      %99 = vector.extract_strided_slice %15 {offsets = [0, 16], sizes = [8, 8], strides = [1, 1]} : vector<8x32xbf16> to vector<8x8xbf16>
      %cst_56 = arith.constant dense<0.000000e+00> : vector<8x8xf32>
      %100 = tpu.matmul %98, %99, %cst_56 {dimension_numbers = #tpu.dot_dimension_numbers<[1], [1], [0], [0], [0, 0, 1, 0], [], []>} : vector<8x8xbf16>, vector<8x8xbf16>, vector<8x8xf32> -> vector<8x8xf32>
      %101 = arith.addf %100, %23 : vector<8x8xf32>
      %c2 = arith.constant 2 : index
      %c0_57 = arith.constant 0 : index
      %c0_58 = arith.constant 0 : index
      %102 = vector.load %arg7[%c2, %c0_57, %c0_58] : memref<4x8x1xf32, #tpu.memory_space<vmem>>, vector<1x8x1xf32>
      %103 = vector.shape_cast %102 : vector<1x8x1xf32> to vector<8x1xf32>
      %cst_59 = arith.constant dense<0xFF800000> : vector<8xf32>
      %104 = vector.multi_reduction <maximumf>, %101, %cst_59 [1] : vector<8x8xf32> to vector<8xf32>
      %105 = vector.shape_cast %104 : vector<8xf32> to vector<8x1xf32>
      %106 = arith.maximumf %103, %105 : vector<8x1xf32>
      %107 = arith.subf %103, %106 : vector<8x1xf32>
      %108 = math.exp %107 : vector<8x1xf32>
      %109 = vector.broadcast %106 : vector<8x1xf32> to vector<8x8xf32>
      %110 = arith.subf %101, %109 : vector<8x8xf32>
      %111 = math.exp %110 : vector<8x8xf32>
      %c2_60 = arith.constant 2 : index
      %c0_61 = arith.constant 0 : index
      %c0_62 = arith.constant 0 : index
      %112 = vector.load %arg8[%c2_60, %c0_61, %c0_62] : memref<4x8x1xf32, #tpu.memory_space<vmem>>, vector<1x8x1xf32>
      %113 = vector.shape_cast %112 : vector<1x8x1xf32> to vector<8x1xf32>
      %114 = arith.mulf %108, %113 : vector<8x1xf32>
      %cst_63 = arith.constant dense<0.000000e+00> : vector<8xf32>
      %115 = vector.multi_reduction <add>, %111, %cst_63 [1] : vector<8x8xf32> to vector<8xf32>
      %116 = vector.shape_cast %115 : vector<8xf32> to vector<8x1xf32>
      %117 = arith.addf %114, %116 : vector<8x1xf32>
      %c2_64 = arith.constant 2 : index
      %c0_65 = arith.constant 0 : index
      %c0_66 = arith.constant 0 : index
      %118 = vector.load %arg8[%c2_64, %c0_65, %c0_66] : memref<4x8x1xf32, #tpu.memory_space<vmem>>, vector<1x8x1xf32>
      %119 = vector.shape_cast %118 : vector<1x8x1xf32> to vector<8x1xf32>
      %120 = vector.shape_cast %117 : vector<8x1xf32> to vector<1x8x1xf32>
      tpu.vector_store %arg8[%c2_64, %c0_65, %c0_66], %120 {strides = array<i32>} : memref<4x8x1xf32, #tpu.memory_space<vmem>>, vector<1x8x1xf32>,
      %c2_67 = arith.constant 2 : index
      %c0_68 = arith.constant 0 : index
      %c0_69 = arith.constant 0 : index
      %121 = vector.load %arg9[%c2_67, %c0_68, %c0_69] : memref<4x8x8xf32, #tpu.memory_space<vmem>>, vector<1x8x8xf32>
      %122 = vector.shape_cast %121 : vector<1x8x8xf32> to vector<8x8xf32>
      %123 = vector.broadcast %108 : vector<8x1xf32> to vector<8x8xf32>
      %124 = arith.mulf %123, %122 : vector<8x8xf32>
      %125 = arith.truncf %111 : vector<8x8xf32> to vector<8x8xbf16>
      %126 = vector.extract_strided_slice %17 {offsets = [0, 16], sizes = [8, 8], strides = [1, 1]} : vector<8x32xbf16> to vector<8x8xbf16>
      %cst_70 = arith.constant dense<0.000000e+00> : vector<8x8xf32>
      %127 = tpu.matmul %125, %126, %cst_70 {dimension_numbers = #tpu.dot_dimension_numbers<[1], [0], [0], [1], [0, 0, 1, 1], [], []>} : vector<8x8xbf16>, vector<8x8xbf16>, vector<8x8xf32> -> vector<8x8xf32>
      %128 = arith.addf %124, %127 : vector<8x8xf32>
      %c2_71 = arith.constant 2 : index
      %c0_72 = arith.constant 0 : index
      %c0_73 = arith.constant 0 : index
      %129 = vector.load %arg9[%c2_71, %c0_72, %c0_73] : memref<4x8x8xf32, #tpu.memory_space<vmem>>, vector<1x8x8xf32>
      %130 = vector.shape_cast %129 : vector<1x8x8xf32> to vector<8x8xf32>
      %131 = vector.shape_cast %128 : vector<8x8xf32> to vector<1x8x8xf32>
      tpu.vector_store %arg9[%c2_71, %c0_72, %c0_73], %131 {strides = array<i32>} : memref<4x8x8xf32, #tpu.memory_space<vmem>>, vector<1x8x8xf32>,
      %c2_74 = arith.constant 2 : index
      %c0_75 = arith.constant 0 : index
      %c0_76 = arith.constant 0 : index
      %132 = vector.load %arg7[%c2_74, %c0_75, %c0_76] : memref<4x8x1xf32, #tpu.memory_space<vmem>>, vector<1x8x1xf32>
      %133 = vector.shape_cast %132 : vector<1x8x1xf32> to vector<8x1xf32>
      %134 = vector.shape_cast %106 : vector<8x1xf32> to vector<1x8x1xf32>
      tpu.vector_store %arg7[%c2_74, %c0_75, %c0_76], %134 {strides = array<i32>} : memref<4x8x1xf32, #tpu.memory_space<vmem>>, vector<1x8x1xf32>,
      %135 = vector.extract_strided_slice %13 {offsets = [0, 24], sizes = [8, 8], strides = [1, 1]} : vector<8x32xbf16> to vector<8x8xbf16>
      %136 = vector.extract_strided_slice %15 {offsets = [0, 24], sizes = [8, 8], strides = [1, 1]} : vector<8x32xbf16> to vector<8x8xbf16>
      %cst_77 = arith.constant dense<0.000000e+00> : vector<8x8xf32>
      %137 = tpu.matmul %135, %136, %cst_77 {dimension_numbers = #tpu.dot_dimension_numbers<[1], [1], [0], [0], [0, 0, 1, 0], [], []>} : vector<8x8xbf16>, vector<8x8xbf16>, vector<8x8xf32> -> vector<8x8xf32>
      %138 = arith.addf %137, %23 : vector<8x8xf32>
      %c3 = arith.constant 3 : index
      %c0_78 = arith.constant 0 : index
      %c0_79 = arith.constant 0 : index
      %139 = vector.load %arg7[%c3, %c0_78, %c0_79] : memref<4x8x1xf32, #tpu.memory_space<vmem>>, vector<1x8x1xf32>
      %140 = vector.shape_cast %139 : vector<1x8x1xf32> to vector<8x1xf32>
      %cst_80 = arith.constant dense<0xFF800000> : vector<8xf32>
      %141 = vector.multi_reduction <maximumf>, %138, %cst_80 [1] : vector<8x8xf32> to vector<8xf32>
      %142 = vector.shape_cast %141 : vector<8xf32> to vector<8x1xf32>
      %143 = arith.maximumf %140, %142 : vector<8x1xf32>
      %144 = arith.subf %140, %143 : vector<8x1xf32>
      %145 = math.exp %144 : vector<8x1xf32>
      %146 = vector.broadcast %143 : vector<8x1xf32> to vector<8x8xf32>
      %147 = arith.subf %138, %146 : vector<8x8xf32>
      %148 = math.exp %147 : vector<8x8xf32>
      %c3_81 = arith.constant 3 : index
      %c0_82 = arith.constant 0 : index
      %c0_83 = arith.constant 0 : index
      %149 = vector.load %arg8[%c3_81, %c0_82, %c0_83] : memref<4x8x1xf32, #tpu.memory_space<vmem>>, vector<1x8x1xf32>
      %150 = vector.shape_cast %149 : vector<1x8x1xf32> to vector<8x1xf32>
      %151 = arith.mulf %145, %150 : vector<8x1xf32>
      %cst_84 = arith.constant dense<0.000000e+00> : vector<8xf32>
      %152 = vector.multi_reduction <add>, %148, %cst_84 [1] : vector<8x8xf32> to vector<8xf32>
      %153 = vector.shape_cast %152 : vector<8xf32> to vector<8x1xf32>
      %154 = arith.addf %151, %153 : vector<8x1xf32>
      %c3_85 = arith.constant 3 : index
      %c0_86 = arith.constant 0 : index
      %c0_87 = arith.constant 0 : index
      %155 = vector.load %arg8[%c3_85, %c0_86, %c0_87] : memref<4x8x1xf32, #tpu.memory_space<vmem>>, vector<1x8x1xf32>
      %156 = vector.shape_cast %155 : vector<1x8x1xf32> to vector<8x1xf32>
      %157 = vector.shape_cast %154 : vector<8x1xf32> to vector<1x8x1xf32>
      tpu.vector_store %arg8[%c3_85, %c0_86, %c0_87], %157 {strides = array<i32>} : memref<4x8x1xf32, #tpu.memory_space<vmem>>, vector<1x8x1xf32>,
      %c3_88 = arith.constant 3 : index
      %c0_89 = arith.constant 0 : index
      %c0_90 = arith.constant 0 : index
      %158 = vector.load %arg9[%c3_88, %c0_89, %c0_90] : memref<4x8x8xf32, #tpu.memory_space<vmem>>, vector<1x8x8xf32>
      %159 = vector.shape_cast %158 : vector<1x8x8xf32> to vector<8x8xf32>
      %160 = vector.broadcast %145 : vector<8x1xf32> to vector<8x8xf32>
      %161 = arith.mulf %160, %159 : vector<8x8xf32>
      %162 = arith.truncf %148 : vector<8x8xf32> to vector<8x8xbf16>
      %163 = vector.extract_strided_slice %17 {offsets = [0, 24], sizes = [8, 8], strides = [1, 1]} : vector<8x32xbf16> to vector<8x8xbf16>
      %cst_91 = arith.constant dense<0.000000e+00> : vector<8x8xf32>
      %164 = tpu.matmul %162, %163, %cst_91 {dimension_numbers = #tpu.dot_dimension_numbers<[1], [0], [0], [1], [0, 0, 1, 1], [], []>} : vector<8x8xbf16>, vector<8x8xbf16>, vector<8x8xf32> -> vector<8x8xf32>
      %165 = arith.addf %161, %164 : vector<8x8xf32>
      %c3_92 = arith.constant 3 : index
      %c0_93 = arith.constant 0 : index
      %c0_94 = arith.constant 0 : index
      %166 = vector.load %arg9[%c3_92, %c0_93, %c0_94] : memref<4x8x8xf32, #tpu.memory_space<vmem>>, vector<1x8x8xf32>
      %167 = vector.shape_cast %166 : vector<1x8x8xf32> to vector<8x8xf32>
      %168 = vector.shape_cast %165 : vector<8x8xf32> to vector<1x8x8xf32>
      tpu.vector_store %arg9[%c3_92, %c0_93, %c0_94], %168 {strides = array<i32>} : memref<4x8x8xf32, #tpu.memory_space<vmem>>, vector<1x8x8xf32>,
      %c3_95 = arith.constant 3 : index
      %c0_96 = arith.constant 0 : index
      %c0_97 = arith.constant 0 : index
      %169 = vector.load %arg7[%c3_95, %c0_96, %c0_97] : memref<4x8x1xf32, #tpu.memory_space<vmem>>, vector<1x8x1xf32>
      %170 = vector.shape_cast %169 : vector<1x8x1xf32> to vector<8x1xf32>
      %171 = vector.shape_cast %143 : vector<8x1xf32> to vector<1x8x1xf32>
      tpu.vector_store %arg7[%c3_95, %c0_96, %c0_97], %171 {strides = array<i32>} : memref<4x8x1xf32, #tpu.memory_space<vmem>>, vector<1x8x1xf32>,
    } else {
    }
    %9 = arith.cmpi eq, %arg2, %arg1 : i32
    %10 = arith.extui %9 : i1 to i32
    %c0_i32_3 = arith.constant 0 : i32
    %11 = arith.cmpi ne, %10, %c0_i32_3 : i32
    scf.if %11 {
      %c0 = arith.constant 0 : index
      %c0_4 = arith.constant 0 : index
      %c0_5 = arith.constant 0 : index
      %12 = vector.load %arg8[%c0, %c0_4, %c0_5] : memref<4x8x1xf32, #tpu.memory_space<vmem>>, vector<4x8x1xf32>
      %13 = tpu.reciprocal %12 {approx = true} : vector<4x8x1xf32> -> vector<4x8x1xf32>
      %c0_6 = arith.constant 0 : index
      %c0_7 = arith.constant 0 : index
      %c0_8 = arith.constant 0 : index
      %14 = vector.load %arg9[%c0_6, %c0_7, %c0_8] : memref<4x8x8xf32, #tpu.memory_space<vmem>>, vector<1x8x8xf32>
      %15 = vector.shape_cast %14 : vector<1x8x8xf32> to vector<8x8xf32>
      %16 = vector.extract_strided_slice %13 {offsets = [0, 0, 0], sizes = [1, 8, 1], strides = [1, 1, 1]} : vector<4x8x1xf32> to vector<1x8x1xf32>
      %17 = vector.shape_cast %16 : vector<1x8x1xf32> to vector<8x1xf32>
      %18 = vector.broadcast %17 : vector<8x1xf32> to vector<8x8xf32>
      %19 = arith.mulf %15, %18 : vector<8x8xf32>
      %20 = arith.truncf %19 : vector<8x8xf32> to vector<8x8xbf16>
      %c1 = arith.constant 1 : index
      %c0_9 = arith.constant 0 : index
      %c0_10 = arith.constant 0 : index
      %21 = vector.load %arg9[%c1, %c0_9, %c0_10] : memref<4x8x8xf32, #tpu.memory_space<vmem>>, vector<1x8x8xf32>
      %22 = vector.shape_cast %21 : vector<1x8x8xf32> to vector<8x8xf32>
      %23 = vector.extract_strided_slice %13 {offsets = [1, 0, 0], sizes = [1, 8, 1], strides = [1, 1, 1]} : vector<4x8x1xf32> to vector<1x8x1xf32>
      %24 = vector.shape_cast %23 : vector<1x8x1xf32> to vector<8x1xf32>
      %25 = vector.broadcast %24 : vector<8x1xf32> to vector<8x8xf32>
      %26 = arith.mulf %22, %25 : vector<8x8xf32>
      %27 = arith.truncf %26 : vector<8x8xf32> to vector<8x8xbf16>
      %c2 = arith.constant 2 : index
      %c0_11 = arith.constant 0 : index
      %c0_12 = arith.constant 0 : index
      %28 = vector.load %arg9[%c2, %c0_11, %c0_12] : memref<4x8x8xf32, #tpu.memory_space<vmem>>, vector<1x8x8xf32>
      %29 = vector.shape_cast %28 : vector<1x8x8xf32> to vector<8x8xf32>
      %30 = vector.extract_strided_slice %13 {offsets = [2, 0, 0], sizes = [1, 8, 1], strides = [1, 1, 1]} : vector<4x8x1xf32> to vector<1x8x1xf32>
      %31 = vector.shape_cast %30 : vector<1x8x1xf32> to vector<8x1xf32>
      %32 = vector.broadcast %31 : vector<8x1xf32> to vector<8x8xf32>
      %33 = arith.mulf %29, %32 : vector<8x8xf32>
      %34 = arith.truncf %33 : vector<8x8xf32> to vector<8x8xbf16>
      %c3 = arith.constant 3 : index
      %c0_13 = arith.constant 0 : index
      %c0_14 = arith.constant 0 : index
      %35 = vector.load %arg9[%c3, %c0_13, %c0_14] : memref<4x8x8xf32, #tpu.memory_space<vmem>>, vector<1x8x8xf32>
      %36 = vector.shape_cast %35 : vector<1x8x8xf32> to vector<8x8xf32>
      %37 = vector.extract_strided_slice %13 {offsets = [3, 0, 0], sizes = [1, 8, 1], strides = [1, 1, 1]} : vector<4x8x1xf32> to vector<1x8x1xf32>
      %38 = vector.shape_cast %37 : vector<1x8x1xf32> to vector<8x1xf32>
      %39 = vector.broadcast %38 : vector<8x1xf32> to vector<8x8xf32>
      %40 = arith.mulf %36, %39 : vector<8x8xf32>
      %41 = arith.truncf %40 : vector<8x8xf32> to vector<8x8xbf16>
      %42 = tpu.concatenate %20, %27, %34, %41 in 1 : vector<8x8xbf16>, vector<8x8xbf16>, vector<8x8xbf16>, vector<8x8xbf16> -> vector<8x32xbf16>
      %c0_15 = arith.constant 0 : index
      %c0_16 = arith.constant 0 : index
      %c0_17 = arith.constant 0 : index
      %43 = vector.load %arg6[%c0_15, %c0_16, %c0_17] : memref<1x8x32xbf16, #tpu.memory_space<vmem>>, vector<1x8x32xbf16>
      %44 = vector.shape_cast %43 : vector<1x8x32xbf16> to vector<8x32xbf16>
      %45 = vector.shape_cast %42 : vector<8x32xbf16> to vector<1x8x32xbf16>
      tpu.vector_store %arg6[%c0_15, %c0_16, %c0_17], %45 {strides = array<i32>} : memref<1x8x32xbf16, #tpu.memory_space<vmem>>, vector<1x8x32xbf16>,
    } else {
    }
    return
  }
  func.func @transform_0(%arg0: i32, %arg1: i32, %arg2: i32) -> (i32, i32, i32) {
    %c0_i32 = arith.constant 0 : i32
    %c0_i32_0 = arith.constant 0 : i32
    return %arg0, %arg1, %c0_i32 : i32, i32, i32
  }
  func.func @transform_1(%arg0: i32, %arg1: i32, %arg2: i32) -> (i32, i32, i32) {
    %0 = arith.minsi %arg2, %arg1 : i32
    %c0_i32 = arith.constant 0 : i32
    %c0_i32_0 = arith.constant 0 : i32
    return %arg0, %0, %c0_i32 : i32, i32, i32
  }
  func.func @transform_2(%arg0: i32, %arg1: i32, %arg2: i32) -> (i32, i32, i32) {
    %0 = arith.minsi %arg2, %arg1 : i32
    %c0_i32 = arith.constant 0 : i32
    %c0_i32_0 = arith.constant 0 : i32
    return %arg0, %0, %c0_i32 : i32, i32, i32
  }
  func.func @transform_3(%arg0: i32, %arg1: i32, %arg2: i32) -> (i32, i32, i32) {
    %c0_i32 = arith.constant 0 : i32
    %c0_i32_0 = arith.constant 0 : i32
    return %arg0, %arg1, %c0_i32 : i32, i32, i32
  }
}

</mosaic_0001>

<llo_original>
// kernel: multi_head_attention.3
$region0: #{multi_head_attention.3}
  #allocation0 [shape = 'u32[]', space=smem, size = 0x4, offset = 0x4, fixed_abs, tag = 'smem constant byte address 0x4 - core index']
  #allocation1 [shape = 'u32[72,128]{1,0:T(1,128)}', space=vmem, size = 0x9000, scoped, tag = 'internal scratch']
  %s0 = inlined_call_operand.vmem [shape: f32[32,32], index: 0, kind: input, shape index: {}]
  %s1 = inlined_call_operand.vmem [shape: bf16[32,96], index: 1, kind: input, shape index: {}]
  %s2 = inlined_call_operand.vmem [shape: bf16[32,32], index: 2, kind: output, shape index: {0}]
  %s3 = inlined_call_operand.vmem [shape: bf16[32,32], index: 3, kind: output, shape index: {1}]
  %s4 = inlined_call_operand.vmem [shape: bf16[32,32], index: 4, kind: output, shape index: {2}]
  %5 = xla_tuple %s2, %s3, %s4
  %s6 = sld [smem:[#allocation0]]
  $region57: #{multi_head_attention.3} parent=0
    _
  %s8 = ssub.s32 1, %s6
  %s9 = scalar_select 0, %s8, %s6
  loop: start=0, step=1, limit=6
  $region2: #{multi_head_attention.3} parent=0 // loop_pre_header
    _
  $region3: #{multi_head_attention.3} parent=0 // loop_header
    %s11 = sphi 0, %s15
    %p12 = scmp.ge.s32.totalorder %s11, 6
    %s21 = sphi 0, %s23
    %s24 = sphi 0, %s21
    %s25 = sphi 0, %s24
    %s41 = sphi 0, %s25
    %s45 = sphi 0, %s45
    %s47 = sphi 0, %s45
    %s48 = sphi 0, %s47
    %s62 = sphi 0, %s48
    %s68 = sphi 0, %s70
    %s71 = sphi 0, %s68
    %s72 = sphi 0, %s71
    %s88 = sphi 0, %s72
    %s94 = sphi 0, %s96
    %s97 = sphi 0, %s94
    %s98 = sphi 0, %s97
    %s114 = sphi 0, %s98
    %s120 = sphi 0, %s122
    %s123 = sphi 0, %s120
    %s124 = sphi 0, %s123
    %s140 = sphi 0, %s124
  $region4: #{multi_head_attention.3} parent=0 // loop_header_branch
    %14 = sbr.rel (%p12) target = $region8
  $region5: #{multi_head_attention.3} parent=0 // loop_body
    %s16 = ssub.s32 %s11, 1
    %s17 = ssub.s32 %s11, 2
    %s18 = sadd.s32 %s11, 1
    %s19 = ssub.s32 %s11, %s18
    %p20 = scmp.eq.s32.totalorder %s19, 0
    %s22 = sadd.s32 %s21, 1
    %s23 = scalar_select %p20, %s21, %s22
    %p26 = pneg %p20
    %p27 = scmp.eq.s32.totalorder %s11, 3
    %p28 = por %p26, %p27
    %p29 = scmp.ne.s32.totalorder %s21, %s24
    %p30 = scmp.eq.s32.totalorder %s11, 0
    %p31 = por %p29, %p30
    %p32 = scmp.ne.s32.totalorder %s21, %s24
    %p33 = scmp.eq.s32.totalorder %s16, 3
    %p34 = por %p32, %p33
    %p35 = scmp.ne.s32.totalorder %s24, %s25
    %p36 = scmp.eq.s32.totalorder %s16, 0
    %p37 = por %p35, %p36
    %p38 = scmp.ne.s32.totalorder %s24, %s25
    %p39 = scmp.eq.s32.totalorder %s17, 3
    %p40 = por %p38, %p39
    %p42 = scmp.ne.s32.totalorder %s25, %s41
    %p43 = scmp.eq.s32.totalorder %s17, 0
    %p44 = por %p42, %p43
    %s46 = sadd.s32 %s45, 1
    %p49 = scmp.eq.s32.totalorder %s11, 3
    %p50 = scmp.ne.s32.totalorder %s45, %s47
    %p51 = scmp.eq.s32.totalorder %s11, 0
    %p52 = por %p50, %p51
    %p53 = scmp.ne.s32.totalorder %s45, %s47
    %p54 = scmp.eq.s32.totalorder %s16, 3
    %p55 = por %p53, %p54
    %p56 = scmp.ne.s32.totalorder %s47, %s48
    %p57 = scmp.eq.s32.totalorder %s16, 0
    %p58 = por %p56, %p57
    %p59 = scmp.ne.s32.totalorder %s47, %s48
    %p60 = scmp.eq.s32.totalorder %s17, 3
    %p61 = por %p59, %p60
    %p63 = scmp.ne.s32.totalorder %s48, %s62
    %p64 = scmp.eq.s32.totalorder %s17, 0
    %p65 = por %p63, %p64
    %s66 = ssub.s32 %s11, %s18
    %p67 = scmp.eq.s32.totalorder %s66, 0
    %s69 = sadd.s32 %s68, 1
    %s70 = scalar_select %p67, %s68, %s69
    %p73 = pneg %p67
    %p74 = scmp.eq.s32.totalorder %s11, 3
    %p75 = por %p73, %p74
    %p76 = scmp.ne.s32.totalorder %s68, %s71
    %p77 = scmp.eq.s32.totalorder %s11, 0
    %p78 = por %p76, %p77
    %p79 = scmp.ne.s32.totalorder %s68, %s71
    %p80 = scmp.eq.s32.totalorder %s16, 3
    %p81 = por %p79, %p80
    %p82 = scmp.ne.s32.totalorder %s71, %s72
    %p83 = scmp.eq.s32.totalorder %s16, 0
    %p84 = por %p82, %p83
    %p85 = scmp.ne.s32.totalorder %s71, %s72
    %p86 = scmp.eq.s32.totalorder %s17, 3
    %p87 = por %p85, %p86
    %p89 = scmp.ne.s32.totalorder %s72, %s88
    %p90 = scmp.eq.s32.totalorder %s17, 0
    %p91 = por %p89, %p90
    %s92 = ssub.s32 %s11, %s18
    %p93 = scmp.eq.s32.totalorder %s92, 0
    %s95 = sadd.s32 %s94, 1
    %s96 = scalar_select %p93, %s94, %s95
    %p99 = pneg %p93
    %p100 = scmp.eq.s32.totalorder %s11, 3
    %p101 = por %p99, %p100
    %p102 = scmp.ne.s32.totalorder %s94, %s97
    %p103 = scmp.eq.s32.totalorder %s11, 0
    %p104 = por %p102, %p103
    %p105 = scmp.ne.s32.totalorder %s94, %s97
    %p106 = scmp.eq.s32.totalorder %s16, 3
    %p107 = por %p105, %p106
    %p108 = scmp.ne.s32.totalorder %s97, %s98
    %p109 = scmp.eq.s32.totalorder %s16, 0
    %p110 = por %p108, %p109
    %p111 = scmp.ne.s32.totalorder %s97, %s98
    %p112 = scmp.eq.s32.totalorder %s17, 3
    %p113 = por %p111, %p112
    %p115 = scmp.ne.s32.totalorder %s98, %s114
    %p116 = scmp.eq.s32.totalorder %s17, 0
    %p117 = por %p115, %p116
    %s118 = ssub.s32 %s11, %s18
    %p119 = scmp.eq.s32.totalorder %s118, 0
    %s121 = sadd.s32 %s120, 1
    %s122 = scalar_select %p119, %s120, %s121
    %p125 = pneg %p119
    %p126 = scmp.eq.s32.totalorder %s11, 3
    %p127 = por %p125, %p126
    %p128 = scmp.ne.s32.totalorder %s120, %s123
    %p129 = scmp.eq.s32.totalorder %s11, 0
    %p130 = por %p128, %p129
    %p131 = scmp.ne.s32.totalorder %s120, %s123
    %p132 = scmp.eq.s32.totalorder %s16, 3
    %p133 = por %p131, %p132
    %p134 = scmp.ne.s32.totalorder %s123, %s124
    %p135 = scmp.eq.s32.totalorder %s16, 0
    %p136 = por %p134, %p135
    %p137 = scmp.ne.s32.totalorder %s123, %s124
    %p138 = scmp.eq.s32.totalorder %s17, 3
    %p139 = por %p137, %p138
    %p141 = scmp.ne.s32.totalorder %s124, %s140
    %p142 = scmp.eq.s32.totalorder %s17, 0
    %p143 = por %p141, %p142
    %p144 = scmp.le.s32.totalorder 1, %s11
    %p145 = scmp.lt.s32.totalorder %s11, 5
    %p146 = pnand %p144, %p145
    %p147 = pneg %p146
    // Predicated region
    $region9: #{multi_head_attention.3} parent=5 // pred_check
      _
    $region10: #{multi_head_attention.3} parent=5 // pred_check_branch
      %149 = sbr.rel (%p146) target = $region12
    $region11: #{multi_head_attention.3} parent=5 // pred_region
      %s150 = ssub.s32 %s11, 1
      // Predicated region
      $region13: #{multi_head_attention.3} parent=11 // pred_check
        %p151 = pneg %p58
      $region14: #{multi_head_attention.3} parent=11 // pred_check_branch
        %153 = sbr.rel (%p151) target = $region16
      $region15: #{multi_head_attention.3} parent=11 // pred_region
        _
      $region16: #{multi_head_attention.3} parent=11 // pred_fallthru
        _
    $region12: #{multi_head_attention.3} parent=5 // pred_fallthru
      _
    %p154 = scmp.lt.s32.totalorder %s11, 4
    // Predicated region
    $region17: #{multi_head_attention.3} parent=5 // pred_check
      %p155 = pneg %p154
    $region18: #{multi_head_attention.3} parent=5 // pred_check_branch
      %157 = sbr.rel (%p155) target = $region20
    $region19: #{multi_head_attention.3} parent=5 // pred_region
      // Predicated region
      $region21: #{multi_head_attention.3} parent=19 // pred_check
        %p158 = pneg %p31
      $region22: #{multi_head_attention.3} parent=19 // pred_check_branch
        %160 = sbr.rel (%p158) target = $region24
      $region23: #{multi_head_attention.3} parent=19 // pred_region
        %p161 = scmp.lt.s32.totalorder %s11, 3
        %s162 = scalar_select %p161, %s11, 3
        %s163 = smul.addr %s162, 8
        %s164 = scalar_lea.vmem %s0, %s163
      $region24: #{multi_head_attention.3} parent=19 // pred_fallthru
        _
    $region20: #{multi_head_attention.3} parent=5 // pred_fallthru
      _
    %p165 = scmp.le.s32.totalorder 1, %s11
    %p166 = scmp.lt.s32.totalorder %s11, 5
    %p167 = pnand %p165, %p166
    %p168 = pneg %p167
    // Predicated region
    $region25: #{multi_head_attention.3} parent=5 // pred_check
      _
    $region26: #{multi_head_attention.3} parent=5 // pred_check_branch
      %170 = sbr.rel (%p167) target = $region28
    $region27: #{multi_head_attention.3} parent=5 // pred_region
      %s171 = ssub.s32 %s11, 1
      %p172 = scmp.lt.s32.totalorder %s16, 3
      %s173 = scalar_select %p172, %s16, 3
      %s174 = smul.addr %s173, 8
      %s175 = scalar_lea.vmem %s0, %s174
      %p176 = pneg %p37
      %p177 = pneg %p34
      %p178 = pneg %p58
      %p179 = pneg %p55
      %p180 = pneg %p84
      %p181 = pneg %p81
      %p182 = scmp.lt.s32.totalorder %s16, 3
      %s183 = scalar_select %p182, %s16, 3
      %s184 = smul.addr %s183, 4
      %s185 = scalar_lea.vmem %s2, %s184
      %p186 = pneg %p110
      %p187 = pneg %p107
      %p188 = scmp.lt.s32.totalorder %s16, 3
      %s189 = scalar_select %p188, %s16, 3
      %s190 = smul.addr %s189, 4
      %s191 = scalar_lea.vmem %s3, %s190
      %p192 = pneg %p136
      %p193 = pneg %p133
      %p194 = scmp.lt.s32.totalorder %s16, 3
      %s195 = scalar_select %p194, %s16, 3
      %s196 = smul.addr %s195, 4
      %s197 = scalar_lea.vmem %s4, %s196
      %p198 = scmp.lt.s32.totalorder %s16, 3
      %s199 = scalar_select %p198, %s16, 3
      %s200 = smul.addr %s199, 8
      %s201 = scalar_lea.vmem %s0, %s200
      %p202 = scmp.lt.s32.totalorder %s16, 3
      %s203 = scalar_select %p202, %s16, 3
      %s204 = smul.addr %s203, 4
      %s205 = scalar_lea.vmem %s2, %s204
      %p206 = scmp.lt.s32.totalorder %s16, 3
      %s207 = scalar_select %p206, %s16, 3
      %s208 = smul.addr %s207, 4
      %s209 = scalar_lea.vmem %s3, %s208
      %p210 = scmp.lt.s32.totalorder %s16, 3
      %s211 = scalar_select %p210, %s16, 3
      %s212 = smul.addr %s211, 4
      %s213 = scalar_lea.vmem %s4, %s212
      %v215 = vld [vmem:[%s201] sm:$0xff]
      %v216 = vpack.c.bf16 %v215, %v215
      %v217 = vld [vmem:[%s1] sm:$0xf]
      %v218 = vld [vmem:[%s1 + $0x4] sm:$0xf]
      %v219 = vld [vmem:[%s1 + $0x8] sm:$0xf]
      %v220 = vld [vmem:[%s1 + $0xc] sm:$0xf]
      %v225 = vunpack.c.l.b16 %v217
      %v226 = vunpack.c.l.b16 %v218
      %v227 = vunpack.c.l.b16 %v219
      %v228 = vunpack.c.l.b16 %v220
      %v229 = vpack.c.b16 %v226, %v225
      %v230 = vpack.c.b16 %v228, %v227
      %vm233 = vcmask 261120
      %v235 = vsel %vm233, %v216, 0
      %237 = vmatpush.bf16.msra.mxu0 0
      %238 = vmatpush.bf16.msra.mxu0 0
      %239 = vmatpush.bf16.msra.mxu0 0
      %240 = vmatpush.bf16.msra.mxu0 0
      %241 = vmatpush.bf16.msra.mxu0 0
      %242 = vmatpush.bf16.msra.mxu0 0
      %243 = vmatpush.bf16.msra.mxu0 %v230
      %244 = vmatpush.bf16.msra.mxu0 %v229
      %245 = vmatmul.bf16.gmra.mxu0 %v235
      %v246 = vpop.f32.mrf.mxu0
      %v247 = vadd.f32 0.0, %v246
      %v248 = vpop.f32.mrf.mxu0
      %249 = vdwg.mxu0
      %v250 = vpack.c.bf16 %v247, %v247
      %vm251 = vcmask 257024
      %252 = vst.msk [vmem:[%s205] sm:$0xf] %vm251, %v250
      %254 = vrot.lane.b32.xlu0 %v250, 96
      %v255 = vpop.permute.xlu0 %254
      %257 = vst.msk [vmem:[%s209] sm:$0xf] %vm251, %v255
      %258 = vrot.lane.b32.xlu0 %v250, 64
      %v259 = vpop.permute.xlu0 %258
      %261 = vst.msk [vmem:[%s213] sm:$0xf] %vm251, %v259
      %p262 = scmp.lt.s32.totalorder %s16, 3
      %s263 = scalar_select %p262, %s16, 3
      %s264 = smul.addr %s263, 4
      %s265 = scalar_lea.vmem %s2, %s264
      %p266 = scmp.lt.s32.totalorder %s16, 3
      %s267 = scalar_select %p266, %s16, 3
      %s268 = smul.addr %s267, 4
      %s269 = scalar_lea.vmem %s3, %s268
      %p270 = scmp.lt.s32.totalorder %s16, 3
      %s271 = scalar_select %p270, %s16, 3
      %s272 = smul.addr %s271, 4
      %s273 = scalar_lea.vmem %s4, %s272
      // Predicated region
      $region29: #{multi_head_attention.3} parent=27 // pred_check
        %p274 = pneg %p81
      $region30: #{multi_head_attention.3} parent=27 // pred_check_branch
        %276 = sbr.rel (%p274) target = $region32
      $region31: #{multi_head_attention.3} parent=27 // pred_region
        _
      $region32: #{multi_head_attention.3} parent=27 // pred_fallthru
        _
      // Predicated region
      $region33: #{multi_head_attention.3} parent=27 // pred_check
        %p277 = pneg %p107
      $region34: #{multi_head_attention.3} parent=27 // pred_check_branch
        %279 = sbr.rel (%p277) target = $region36
      $region35: #{multi_head_attention.3} parent=27 // pred_region
        _
      $region36: #{multi_head_attention.3} parent=27 // pred_fallthru
        _
      // Predicated region
      $region37: #{multi_head_attention.3} parent=27 // pred_check
        %p280 = pneg %p133
      $region38: #{multi_head_attention.3} parent=27 // pred_check_branch
        %282 = sbr.rel (%p280) target = $region40
      $region39: #{multi_head_attention.3} parent=27 // pred_region
        _
      $region40: #{multi_head_attention.3} parent=27 // pred_fallthru
        _
    $region28: #{multi_head_attention.3} parent=5 // pred_fallthru
      _
    %p283 = scmp.le.s32.totalorder 2, %s11
    // Predicated region
    $region41: #{multi_head_attention.3} parent=5 // pred_check
      %p284 = pneg %p283
    $region42: #{multi_head_attention.3} parent=5 // pred_check_branch
      %286 = sbr.rel (%p284) target = $region44
    $region43: #{multi_head_attention.3} parent=5 // pred_region
      %s287 = ssub.s32 %s11, 2
      // Predicated region
      $region45: #{multi_head_attention.3} parent=43 // pred_check
        %p288 = pneg %p87
      $region46: #{multi_head_attention.3} parent=43 // pred_check_branch
        %290 = sbr.rel (%p288) target = $region48
      $region47: #{multi_head_attention.3} parent=43 // pred_region
        %p291 = scmp.lt.s32.totalorder %s17, 3
        %s292 = scalar_select %p291, %s17, 3
        %s293 = smul.addr %s292, 4
        %s294 = scalar_lea.vmem %s2, %s293
      $region48: #{multi_head_attention.3} parent=43 // pred_fallthru
        _
      // Predicated region
      $region49: #{multi_head_attention.3} parent=43 // pred_check
        %p295 = pneg %p113
      $region50: #{multi_head_attention.3} parent=43 // pred_check_branch
        %297 = sbr.rel (%p295) target = $region52
      $region51: #{multi_head_attention.3} parent=43 // pred_region
        %p298 = scmp.lt.s32.totalorder %s17, 3
        %s299 = scalar_select %p298, %s17, 3
        %s300 = smul.addr %s299, 4
        %s301 = scalar_lea.vmem %s3, %s300
      $region52: #{multi_head_attention.3} parent=43 // pred_fallthru
        _
      // Predicated region
      $region53: #{multi_head_attention.3} parent=43 // pred_check
        %p302 = pneg %p139
      $region54: #{multi_head_attention.3} parent=43 // pred_check_branch
        %304 = sbr.rel (%p302) target = $region56
      $region55: #{multi_head_attention.3} parent=43 // pred_region
        %p305 = scmp.lt.s32.totalorder %s17, 3
        %s306 = scalar_select %p305, %s17, 3
        %s307 = smul.addr %s306, 4
        %s308 = scalar_lea.vmem %s4, %s307
      $region56: #{multi_head_attention.3} parent=43 // pred_fallthru
        _
    $region44: #{multi_head_attention.3} parent=5 // pred_fallthru
      _
  $region6: #{multi_head_attention.3} parent=0 // loop_footer
    %s15 = sadd.s32 1, %s11
  $region7: #{multi_head_attention.3} parent=0 // loop_footer_branch
    %10 = sbr.rel target = $region3
  $region8: #{multi_head_attention.3} parent=0 // loop_exit
    _

// kernel: multi_head_attention.5
$region0: #{multi_head_attention.5}
  #allocation0 [shape = 'u32[]', space=smem, size = 0x4, offset = 0x4, fixed_abs, tag = 'smem constant byte address 0x4 - core index']
  #allocation1 [shape = 'u32[72,128]{1,0:T(1,128)}', space=vmem, size = 0x9000, scoped, tag = 'internal scratch']
  %s0 = inlined_call_operand.vmem [shape: bf16[32,32], index: 0, kind: input, shape index: {}]
  %s1 = inlined_call_operand.vmem [shape: bf16[32,32], index: 1, kind: input, shape index: {}]
  %s2 = inlined_call_operand.vmem [shape: f32[1,32], index: 2, kind: input, shape index: {}]
  %s3 = inlined_call_operand.hbm [shape: f32[32,32], index: 3, kind: output, shape index: {}]
  %s4 = sld [smem:[#allocation0]]
  $region45: #{multi_head_attention.5} parent=0
    _
  %s6 = ssub.s32 1, %s4
  %s7 = scalar_select 0, %s6, %s4
  $region1: #{multi_head_attention.5} parent=0
    #allocation2 [shape = 'u8[8192]{0}', space=vmem, size = 0x2000, scoped, tag = 'output window, operand 0']
    #allocation3 [shape = 's32[2]{0}', space=sflag, size = 0x8, scoped, tag = 'scoped memory for multi_head_attention.5']
    %8 = vsyncpa [#allocation3], 0
    %s9 = scalar_lea.sflag [#allocation3], 1
    %10 = vsyncpa %s9, 0
    loop: start=0, step=1, limit=6
    $region2: #{multi_head_attention.5} parent=1 // loop_pre_header
      _
    $region3: #{multi_head_attention.5} parent=1 // loop_header
      %s12 = sphi 0, %s16
      %p13 = scmp.ge.s32.totalorder %s12, 6
      %s22 = sphi 0, %s24
      %s25 = sphi 0, %s22
      %s26 = sphi 0, %s25
      %s42 = sphi 0, %s26
      %s46 = sphi 0, %s46
      %s48 = sphi 0, %s46
      %s49 = sphi 0, %s48
      %s63 = sphi 0, %s49
      %s67 = sphi 0, %s67
      %s69 = sphi 0, %s67
      %s70 = sphi 0, %s69
      %s84 = sphi 0, %s70
      %s90 = sphi 0, %s92
      %s93 = sphi 0, %s90
      %s94 = sphi 0, %s93
      %s110 = sphi 0, %s94
    $region4: #{multi_head_attention.5} parent=1 // loop_header_branch
      %15 = sbr.rel (%p13) target = $region8
    $region5: #{multi_head_attention.5} parent=1 // loop_body
      %s17 = ssub.s32 %s12, 1
      %s18 = ssub.s32 %s12, 2
      %s19 = sadd.s32 %s12, 1
      %s20 = ssub.s32 %s12, %s19
      %p21 = scmp.eq.s32.totalorder %s20, 0
      %s23 = sadd.s32 %s22, 1
      %s24 = scalar_select %p21, %s22, %s23
      %p27 = pneg %p21
      %p28 = scmp.eq.s32.totalorder %s12, 3
      %p29 = por %p27, %p28
      %p30 = scmp.ne.s32.totalorder %s22, %s25
      %p31 = scmp.eq.s32.totalorder %s12, 0
      %p32 = por %p30, %p31
      %p33 = scmp.ne.s32.totalorder %s22, %s25
      %p34 = scmp.eq.s32.totalorder %s17, 3
      %p35 = por %p33, %p34
      %p36 = scmp.ne.s32.totalorder %s25, %s26
      %p37 = scmp.eq.s32.totalorder %s17, 0
      %p38 = por %p36, %p37
      %p39 = scmp.ne.s32.totalorder %s25, %s26
      %p40 = scmp.eq.s32.totalorder %s18, 3
      %p41 = por %p39, %p40
      %p43 = scmp.ne.s32.totalorder %s26, %s42
      %p44 = scmp.eq.s32.totalorder %s18, 0
      %p45 = por %p43, %p44
      %s47 = sadd.s32 %s46, 1
      %p50 = scmp.eq.s32.totalorder %s12, 3
      %p51 = scmp.ne.s32.totalorder %s46, %s48
      %p52 = scmp.eq.s32.totalorder %s12, 0
      %p53 = por %p51, %p52
      %p54 = scmp.ne.s32.totalorder %s46, %s48
      %p55 = scmp.eq.s32.totalorder %s17, 3
      %p56 = por %p54, %p55
      %p57 = scmp.ne.s32.totalorder %s48, %s49
      %p58 = scmp.eq.s32.totalorder %s17, 0
      %p59 = por %p57, %p58
      %p60 = scmp.ne.s32.totalorder %s48, %s49
      %p61 = scmp.eq.s32.totalorder %s18, 3
      %p62 = por %p60, %p61
      %p64 = scmp.ne.s32.totalorder %s49, %s63
      %p65 = scmp.eq.s32.totalorder %s18, 0
      %p66 = por %p64, %p65
      %s68 = sadd.s32 %s67, 1
      %p71 = scmp.eq.s32.totalorder %s12, 3
      %p72 = scmp.ne.s32.totalorder %s67, %s69
      %p73 = scmp.eq.s32.totalorder %s12, 0
      %p74 = por %p72, %p73
      %p75 = scmp.ne.s32.totalorder %s67, %s69
      %p76 = scmp.eq.s32.totalorder %s17, 3
      %p77 = por %p75, %p76
      %p78 = scmp.ne.s32.totalorder %s69, %s70
      %p79 = scmp.eq.s32.totalorder %s17, 0
      %p80 = por %p78, %p79
      %p81 = scmp.ne.s32.totalorder %s69, %s70
      %p82 = scmp.eq.s32.totalorder %s18, 3
      %p83 = por %p81, %p82
      %p85 = scmp.ne.s32.totalorder %s70, %s84
      %p86 = scmp.eq.s32.totalorder %s18, 0
      %p87 = por %p85, %p86
      %s88 = ssub.s32 %s12, %s19
      %p89 = scmp.eq.s32.totalorder %s88, 0
      %s91 = sadd.s32 %s90, 1
      %s92 = scalar_select %p89, %s90, %s91
      %p95 = pneg %p89
      %p96 = scmp.eq.s32.totalorder %s12, 3
      %p97 = por %p95, %p96
      %p98 = scmp.ne.s32.totalorder %s90, %s93
      %p99 = scmp.eq.s32.totalorder %s12, 0
      %p100 = por %p98, %p99
      %p101 = scmp.ne.s32.totalorder %s90, %s93
      %p102 = scmp.eq.s32.totalorder %s17, 3
      %p103 = por %p101, %p102
      %p104 = scmp.ne.s32.totalorder %s93, %s94
      %p105 = scmp.eq.s32.totalorder %s17, 0
      %p106 = por %p104, %p105
      %p107 = scmp.ne.s32.totalorder %s93, %s94
      %p108 = scmp.eq.s32.totalorder %s18, 3
      %p109 = por %p107, %p108
      %p111 = scmp.ne.s32.totalorder %s94, %s110
      %p112 = scmp.eq.s32.totalorder %s18, 0
      %p113 = por %p111, %p112
      %p114 = scmp.le.s32.totalorder 1, %s12
      %p115 = scmp.lt.s32.totalorder %s12, 5
      %p116 = pnand %p114, %p115
      %p117 = pneg %p116
      // Predicated region
      $region9: #{multi_head_attention.5} parent=5 // pred_check
        _
      $region10: #{multi_head_attention.5} parent=5 // pred_check_branch
        %119 = sbr.rel (%p116) target = $region12
      $region11: #{multi_head_attention.5} parent=5 // pred_region
        %s120 = ssub.s32 %s12, 1
        // Predicated region
        $region13: #{multi_head_attention.5} parent=11 // pred_check
          %p121 = pneg %p59
        $region14: #{multi_head_attention.5} parent=11 // pred_check_branch
          %123 = sbr.rel (%p121) target = $region16
        $region15: #{multi_head_attention.5} parent=11 // pred_region
          _
        $region16: #{multi_head_attention.5} parent=11 // pred_fallthru
          _
        // Predicated region
        $region17: #{multi_head_attention.5} parent=11 // pred_check
          %p124 = pneg %p80
        $region18: #{multi_head_attention.5} parent=11 // pred_check_branch
          %126 = sbr.rel (%p124) target = $region20
        $region19: #{multi_head_attention.5} parent=11 // pred_region
          _
        $region20: #{multi_head_attention.5} parent=11 // pred_fallthru
          _
      $region12: #{multi_head_attention.5} parent=5 // pred_fallthru
        _
      %p127 = scmp.lt.s32.totalorder %s12, 4
      // Predicated region
      $region21: #{multi_head_attention.5} parent=5 // pred_check
        %p128 = pneg %p127
      $region22: #{multi_head_attention.5} parent=5 // pred_check_branch
        %130 = sbr.rel (%p128) target = $region24
      $region23: #{multi_head_attention.5} parent=5 // pred_region
        // Predicated region
        $region25: #{multi_head_attention.5} parent=23 // pred_check
          %p131 = pneg %p32
        $region26: #{multi_head_attention.5} parent=23 // pred_check_branch
          %133 = sbr.rel (%p131) target = $region28
        $region27: #{multi_head_attention.5} parent=23 // pred_region
          %p134 = scmp.lt.s32.totalorder %s12, 3
          %s135 = scalar_select %p134, %s12, 3
          %s136 = smul.addr %s135, 4
          %s137 = scalar_lea.vmem %s0, %s136
        $region28: #{multi_head_attention.5} parent=23 // pred_fallthru
          _
      $region24: #{multi_head_attention.5} parent=5 // pred_fallthru
        _
      %p138 = scmp.le.s32.totalorder 1, %s12
      %p139 = scmp.lt.s32.totalorder %s12, 5
      %p140 = pnand %p138, %p139
      %p141 = pneg %p140
      // Predicated region
      $region29: #{multi_head_attention.5} parent=5 // pred_check
        _
      $region30: #{multi_head_attention.5} parent=5 // pred_check_branch
        %143 = sbr.rel (%p140) target = $region32
      $region31: #{multi_head_attention.5} parent=5 // pred_region
        %s144 = ssub.s32 %s12, 1
        %p145 = scmp.lt.s32.totalorder %s17, 3
        %s146 = scalar_select %p145, %s17, 3
        %s147 = smul.addr %s146, 4
        %s148 = scalar_lea.vmem %s0, %s147
        %p149 = pneg %p38
        %p150 = pneg %p35
        %p151 = pneg %p59
        %p152 = pneg %p56
        %p153 = pneg %p80
        %p154 = pneg %p77
        %p155 = pneg %p106
        %p156 = pneg %p103
        %s157 = sand.u32 %s93, 1
        %s158 = scalar_lea.sflag [#allocation3], %s157
        %s159 = sand.u32 %s93, 1
        %s160 = smul.addr %s159, 8
        %s161 = scalar_lea.vmem [#allocation2], %s160
        %p162 = scmp.lt.s32.totalorder %s17, 3
        %s163 = scalar_select %p162, %s17, 3
        %s164 = smul.addr %s163, 4
        %s165 = scalar_lea.vmem %s0, %s164
        %v167 = vld [vmem:[%s165] sm:$0xf]
        %v168 = vld [vmem:[%s1] sm:$0xf]
        %v169 = vld [vmem:[%s1 + $0x4] sm:$0xf]
        %v170 = vld [vmem:[%s1 + $0x8] sm:$0xf]
        %v171 = vld [vmem:[%s1 + $0xc] sm:$0xf]
        %v172 = vld [vmem:[%s2] sm:$0x1]
        %v174 = vperm.slane %v172, 0
        %v180 = vunpack.c.l.b16 %v168
        %v181 = vunpack.c.l.b16 %v169
        %v182 = vunpack.c.l.b16 %v170
        %v183 = vunpack.c.l.b16 %v171
        %v184 = vpack.c.b16 %v181, %v180
        %v185 = vpack.c.b16 %v183, %v182
        %vm188 = vcmask 261120
        %v190 = vsel %vm188, %v167, 0
        %192 = vmatpush.bf16.msra.mxu0 0
        %193 = vmatpush.bf16.msra.mxu0 0
        %194 = vmatpush.bf16.msra.mxu0 0
        %195 = vmatpush.bf16.msra.mxu0 0
        %196 = vmatpush.bf16.msra.mxu0 0
        %197 = vmatpush.bf16.msra.mxu0 0
        %198 = vmatpush.bf16.msra.mxu0 %v185
        %199 = vmatpush.bf16.msra.mxu0 %v184
        %200 = vmatmul.bf16.gmra.mxu0 %v190
        %v201 = vpop.f32.mrf.mxu0
        %v202 = vadd.f32 %v174, %v201
        %v203 = vpop.f32.mrf.mxu0
        %204 = vdwg.mxu0
        %205 = vst.msk [vmem:[%s161] sm:$0xff] %vm188, %v202
        %s206 = sand.u32 %s93, 1
        %s207 = scalar_lea.sflag [#allocation3], %s206
        %s208 = sand.u32 %s93, 1
        %s209 = smul.addr %s208, 8
        %s210 = scalar_lea.vmem [#allocation2], %s209
        // Predicated region
        $region33: #{multi_head_attention.5} parent=31 // pred_check
          %p211 = pneg %p103
        $region34: #{multi_head_attention.5} parent=31 // pred_check_branch
          %213 = sbr.rel (%p211) target = $region36
        $region35: #{multi_head_attention.5} parent=31 // pred_region
          %215 = vsyncadd %s207, 0
          %s216 = smul.addr %s17, 8
          %s217 = scalar_lea.hbm %s3, %s216
          %s219 = sshll.u32 %s210, 4
          %s220 = int_to_ptr.vmem [resolvable:$true] %s219
          %s221 = sshll.u32 %s217, 4
          %s222 = int_to_ptr.hbm [resolvable:$true] %s221
          %224 = dma.vmem_to_hbm [thread:$0]  %s220, 128, %s222, %s207
        $region36: #{multi_head_attention.5} parent=31 // pred_fallthru
          _
      $region32: #{multi_head_attention.5} parent=5 // pred_fallthru
        _
      %p225 = scmp.le.s32.totalorder 2, %s12
      // Predicated region
      $region37: #{multi_head_attention.5} parent=5 // pred_check
        %p226 = pneg %p225
      $region38: #{multi_head_attention.5} parent=5 // pred_check_branch
        %228 = sbr.rel (%p226) target = $region40
      $region39: #{multi_head_attention.5} parent=5 // pred_region
        %s229 = ssub.s32 %s12, 2
        // Predicated region
        $region41: #{multi_head_attention.5} parent=39 // pred_check
          %p230 = pneg %p109
        $region42: #{multi_head_attention.5} parent=39 // pred_check_branch
          %232 = sbr.rel (%p230) target = $region44
        $region43: #{multi_head_attention.5} parent=39 // pred_region
          %s233 = sand.u32 %s94, 1
          %s234 = scalar_lea.sflag [#allocation3], %s233
          %s235 = sand.u32 %s94, 1
          %s236 = smul.addr %s235, 8
          %s237 = scalar_lea.vmem [#allocation2], %s236
          %239 = dma.done %s234, 128
        $region44: #{multi_head_attention.5} parent=39 // pred_fallthru
          _
      $region40: #{multi_head_attention.5} parent=5 // pred_fallthru
        _
    $region6: #{multi_head_attention.5} parent=1 // loop_footer
      %s16 = sadd.s32 1, %s12
    $region7: #{multi_head_attention.5} parent=1 // loop_footer_branch
      %11 = sbr.rel target = $region3
    $region8: #{multi_head_attention.5} parent=1 // loop_exit
      _
    %240 = vsyncpa [#allocation3], 1
    %s241 = scalar_lea.sflag [#allocation3], 1
    %242 = vsyncpa %s241, 1

// kernel: multi_head_attention.4
$region0: #{multi_head_attention.4}
  #allocation0 [shape = 'u32[]', space=smem, size = 0x4, offset = 0x4, fixed_abs, tag = 'smem constant byte address 0x4 - core index']
  #allocation1 [shape = 'u32[72,128]{1,0:T(1,128)}', space=vmem, size = 0x9000, scoped, tag = 'internal scratch']
  #allocation2 [shape = 'f32[4,8,1]{2,1,0:T(8,128)}', space=vmem, size = 0x4000, scoped, tag = 'scratch operand']
  #allocation3 [shape = 'f32[4,8,1]{2,1,0:T(8,128)}', space=vmem, size = 0x4000, scoped, tag = 'scratch operand']
  #allocation4 [shape = 'f32[4,8,8]{2,1,0:T(8,128)}', space=vmem, size = 0x4000, scoped, tag = 'scratch operand']
  %s0 = inlined_call_operand.vmem [shape: bf16[2,16,32], index: 0, kind: input, shape index: {}]
  %s1 = inlined_call_operand.vmem [shape: bf16[2,16,32], index: 1, kind: input, shape index: {}]
  %s2 = inlined_call_operand.vmem [shape: bf16[2,16,32], index: 2, kind: input, shape index: {}]
  %s3 = inlined_call_operand.vmem [shape: bf16[2,16,32], index: 3, kind: output, shape index: {}]
  %s4 = sld [smem:[#allocation0]]
  $region57: #{multi_head_attention.4} parent=0
    _
  %s6 = ssub.s32 1, %s4
  %s7 = scalar_select 0, %s6, %s4
  loop: start=0, step=1, limit=10
  $region2: #{multi_head_attention.4} parent=0 // loop_pre_header
    _
  $region3: #{multi_head_attention.4} parent=0 // loop_header
    %s9 = sphi 0, %s13
    %p10 = scmp.ge.s32.totalorder %s9, 10
    %s16 = sphi 0, %s35
    %s17 = sphi 0, %s31
    %s18 = sphi 0, %s27
    %s19 = sphi 0, %s16
    %s20 = sphi 0, %s17
    %s21 = sphi 0, %s18
    %s22 = sphi 0, %s19
    %s23 = sphi 0, %s20
    %s24 = sphi 0, %s21
    %s40 = sphi 0, %s42
    %s43 = sphi 0, %s40
    %s44 = sphi 0, %s43
    %s60 = sphi 0, %s44
    %s72 = sphi 0, %s74
    %s75 = sphi 0, %s72
    %s76 = sphi 0, %s75
    %s92 = sphi 0, %s76
    %s104 = sphi 0, %s106
    %s107 = sphi 0, %s104
    %s108 = sphi 0, %s107
    %s124 = sphi 0, %s108
    %s132 = sphi 0, %s134
    %s135 = sphi 0, %s132
    %s136 = sphi 0, %s135
    %s152 = sphi 0, %s136
  $region4: #{multi_head_attention.4} parent=0 // loop_header_branch
    %12 = sbr.rel (%p10) target = $region8
  $region5: #{multi_head_attention.4} parent=0 // loop_body
    %s14 = ssub.s32 %s9, 1
    %s15 = ssub.s32 %s9, 2
    %s25 = sadd.s32 1, %s18
    %p26 = scmp.ge.s32.totalorder %s25, 2
    %s27 = scalar_select %p26, 0, %s25
    %s28 = sadd.s32 1, %s17
    %s29 = scalar_select %p26, %s28, %s17
    %p30 = scmp.ge.s32.totalorder %s29, 2
    %s31 = scalar_select %p30, 0, %s29
    %s32 = sadd.s32 1, %s16
    %s33 = scalar_select %p30, %s32, %s16
    %p34 = scmp.ge.s32.totalorder %s33, 2
    %s35 = scalar_select %p34, 0, %s33
    %s36 = ssub.s32 %s16, %s35
    %s37 = ssub.s32 %s17, %s31
    %s38 = sor.u32 %s36, %s37
    %p39 = scmp.eq.s32.totalorder %s38, 0
    %s41 = sadd.s32 %s40, 1
    %s42 = scalar_select %p39, %s40, %s41
    %p45 = pneg %p39
    %p46 = scmp.eq.s32.totalorder %s9, 7
    %p47 = por %p45, %p46
    %p48 = scmp.ne.s32.totalorder %s40, %s43
    %p49 = scmp.eq.s32.totalorder %s9, 0
    %p50 = por %p48, %p49
    %p51 = scmp.ne.s32.totalorder %s40, %s43
    %p52 = scmp.eq.s32.totalorder %s14, 7
    %p53 = por %p51, %p52
    %p54 = scmp.ne.s32.totalorder %s43, %s44
    %p55 = scmp.eq.s32.totalorder %s14, 0
    %p56 = por %p54, %p55
    %p57 = scmp.ne.s32.totalorder %s43, %s44
    %p58 = scmp.eq.s32.totalorder %s15, 7
    %p59 = por %p57, %p58
    %p61 = scmp.ne.s32.totalorder %s44, %s60
    %p62 = scmp.eq.s32.totalorder %s15, 0
    %p63 = por %p61, %p62
    %p64 = scmp.lt.s32.totalorder %s18, %s17
    %s65 = scalar_select %p64, %s18, %s17
    %p66 = scmp.lt.s32.totalorder %s27, %s31
    %s67 = scalar_select %p66, %s27, %s31
    %s68 = ssub.s32 %s16, %s35
    %s69 = ssub.s32 %s65, %s67
    %s70 = sor.u32 %s68, %s69
    %p71 = scmp.eq.s32.totalorder %s70, 0
    %s73 = sadd.s32 %s72, 1
    %s74 = scalar_select %p71, %s72, %s73
    %p77 = pneg %p71
    %p78 = scmp.eq.s32.totalorder %s9, 7
    %p79 = por %p77, %p78
    %p80 = scmp.ne.s32.totalorder %s72, %s75
    %p81 = scmp.eq.s32.totalorder %s9, 0
    %p82 = por %p80, %p81
    %p83 = scmp.ne.s32.totalorder %s72, %s75
    %p84 = scmp.eq.s32.totalorder %s14, 7
    %p85 = por %p83, %p84
    %p86 = scmp.ne.s32.totalorder %s75, %s76
    %p87 = scmp.eq.s32.totalorder %s14, 0
    %p88 = por %p86, %p87
    %p89 = scmp.ne.s32.totalorder %s75, %s76
    %p90 = scmp.eq.s32.totalorder %s15, 7
    %p91 = por %p89, %p90
    %p93 = scmp.ne.s32.totalorder %s76, %s92
    %p94 = scmp.eq.s32.totalorder %s15, 0
    %p95 = por %p93, %p94
    %p96 = scmp.lt.s32.totalorder %s18, %s17
    %s97 = scalar_select %p96, %s18, %s17
    %p98 = scmp.lt.s32.totalorder %s27, %s31
    %s99 = scalar_select %p98, %s27, %s31
    %s100 = ssub.s32 %s16, %s35
    %s101 = ssub.s32 %s97, %s99
    %s102 = sor.u32 %s100, %s101
    %p103 = scmp.eq.s32.totalorder %s102, 0
    %s105 = sadd.s32 %s104, 1
    %s106 = scalar_select %p103, %s104, %s105
    %p109 = pneg %p103
    %p110 = scmp.eq.s32.totalorder %s9, 7
    %p111 = por %p109, %p110
    %p112 = scmp.ne.s32.totalorder %s104, %s107
    %p113 = scmp.eq.s32.totalorder %s9, 0
    %p114 = por %p112, %p113
    %p115 = scmp.ne.s32.totalorder %s104, %s107
    %p116 = scmp.eq.s32.totalorder %s14, 7
    %p117 = por %p115, %p116
    %p118 = scmp.ne.s32.totalorder %s107, %s108
    %p119 = scmp.eq.s32.totalorder %s14, 0
    %p120 = por %p118, %p119
    %p121 = scmp.ne.s32.totalorder %s107, %s108
    %p122 = scmp.eq.s32.totalorder %s15, 7
    %p123 = por %p121, %p122
    %p125 = scmp.ne.s32.totalorder %s108, %s124
    %p126 = scmp.eq.s32.totalorder %s15, 0
    %p127 = por %p125, %p126
    %s128 = ssub.s32 %s16, %s35
    %s129 = ssub.s32 %s17, %s31
    %s130 = sor.u32 %s128, %s129
    %p131 = scmp.eq.s32.totalorder %s130, 0
    %s133 = sadd.s32 %s132, 1
    %s134 = scalar_select %p131, %s132, %s133
    %p137 = pneg %p131
    %p138 = scmp.eq.s32.totalorder %s9, 7
    %p139 = por %p137, %p138
    %p140 = scmp.ne.s32.totalorder %s132, %s135
    %p141 = scmp.eq.s32.totalorder %s9, 0
    %p142 = por %p140, %p141
    %p143 = scmp.ne.s32.totalorder %s132, %s135
    %p144 = scmp.eq.s32.totalorder %s14, 7
    %p145 = por %p143, %p144
    %p146 = scmp.ne.s32.totalorder %s135, %s136
    %p147 = scmp.eq.s32.totalorder %s14, 0
    %p148 = por %p146, %p147
    %p149 = scmp.ne.s32.totalorder %s135, %s136
    %p150 = scmp.eq.s32.totalorder %s15, 7
    %p151 = por %p149, %p150
    %p153 = scmp.ne.s32.totalorder %s136, %s152
    %p154 = scmp.eq.s32.totalorder %s15, 0
    %p155 = por %p153, %p154
    %p156 = scmp.le.s32.totalorder 1, %s9
    %p157 = scmp.lt.s32.totalorder %s9, 9
    %p158 = pnand %p156, %p157
    %p159 = pneg %p158
    // Predicated region
    $region9: #{multi_head_attention.4} parent=5 // pred_check
      _
    $region10: #{multi_head_attention.4} parent=5 // pred_check_branch
      %161 = sbr.rel (%p158) target = $region12
    $region11: #{multi_head_attention.4} parent=5 // pred_region
      %s162 = ssub.s32 %s9, 1
    $region12: #{multi_head_attention.4} parent=5 // pred_fallthru
      _
    %p163 = scmp.lt.s32.totalorder %s9, 8
    // Predicated region
    $region13: #{multi_head_attention.4} parent=5 // pred_check
      %p164 = pneg %p163
    $region14: #{multi_head_attention.4} parent=5 // pred_check_branch
      %166 = sbr.rel (%p164) target = $region16
    $region15: #{multi_head_attention.4} parent=5 // pred_region
      // Predicated region
      $region17: #{multi_head_attention.4} parent=15 // pred_check
        %p167 = pneg %p50
      $region18: #{multi_head_attention.4} parent=15 // pred_check_branch
        %169 = sbr.rel (%p167) target = $region20
      $region19: #{multi_head_attention.4} parent=15 // pred_region
        %p170 = scmp.lt.s32.totalorder %s16, 1
        %s171 = scalar_select %p170, %s16, 1
        %p172 = scmp.lt.s32.totalorder %s17, 1
        %s173 = scalar_select %p172, %s17, 1
        %s174 = smul.addr %s171, 2
        %s175 = sadd.s32 %s173, %s174
        %s176 = smul.addr %s175, 4
        %s177 = scalar_lea.vmem %s0, %s176
      $region20: #{multi_head_attention.4} parent=15 // pred_fallthru
        _
      // Predicated region
      $region21: #{multi_head_attention.4} parent=15 // pred_check
        %p178 = pneg %p82
      $region22: #{multi_head_attention.4} parent=15 // pred_check_branch
        %180 = sbr.rel (%p178) target = $region24
      $region23: #{multi_head_attention.4} parent=15 // pred_region
        %p181 = scmp.lt.s32.totalorder %s18, %s17
        %s182 = scalar_select %p181, %s18, %s17
        %p183 = scmp.lt.s32.totalorder %s16, 1
        %s184 = scalar_select %p183, %s16, 1
        %p185 = scmp.lt.s32.totalorder %s182, 1
        %s186 = scalar_select %p185, %s182, 1
        %s187 = smul.addr %s184, 2
        %s188 = sadd.s32 %s186, %s187
        %s189 = smul.addr %s188, 4
        %s190 = scalar_lea.vmem %s1, %s189
        %p191 = scmp.lt.s32.totalorder %s18, %s17
        %s192 = scalar_select %p191, %s18, %s17
      $region24: #{multi_head_attention.4} parent=15 // pred_fallthru
        _
      // Predicated region
      $region25: #{multi_head_attention.4} parent=15 // pred_check
        %p193 = pneg %p114
      $region26: #{multi_head_attention.4} parent=15 // pred_check_branch
        %195 = sbr.rel (%p193) target = $region28
      $region27: #{multi_head_attention.4} parent=15 // pred_region
        %p196 = scmp.lt.s32.totalorder %s18, %s17
        %s197 = scalar_select %p196, %s18, %s17
        %p198 = scmp.lt.s32.totalorder %s16, 1
        %s199 = scalar_select %p198, %s16, 1
        %p200 = scmp.lt.s32.totalorder %s197, 1
        %s201 = scalar_select %p200, %s197, 1
        %s202 = smul.addr %s199, 2
        %s203 = sadd.s32 %s201, %s202
        %s204 = smul.addr %s203, 4
        %s205 = scalar_lea.vmem %s2, %s204
        %p206 = scmp.lt.s32.totalorder %s18, %s17
        %s207 = scalar_select %p206, %s18, %s17
      $region28: #{multi_head_attention.4} parent=15 // pred_fallthru
        _
    $region16: #{multi_head_attention.4} parent=5 // pred_fallthru
      _
    %p208 = scmp.le.s32.totalorder 1, %s9
    %p209 = scmp.lt.s32.totalorder %s9, 9
    %p210 = pnand %p208, %p209
    %p211 = pneg %p210
    // Predicated region
    $region29: #{multi_head_attention.4} parent=5 // pred_check
      _
    $region30: #{multi_head_attention.4} parent=5 // pred_check_branch
      %213 = sbr.rel (%p210) target = $region32
    $region31: #{multi_head_attention.4} parent=5 // pred_region
      %s214 = ssub.s32 %s9, 1
      %p215 = scmp.lt.s32.totalorder %s19, 1
      %s216 = scalar_select %p215, %s19, 1
      %p217 = scmp.lt.s32.totalorder %s20, 1
      %s218 = scalar_select %p217, %s20, 1
      %s219 = smul.addr %s216, 2
      %s220 = sadd.s32 %s218, %s219
      %s221 = smul.addr %s220, 4
      %s222 = scalar_lea.vmem %s0, %s221
      %p223 = pneg %p56
      %p224 = pneg %p53
      %p225 = scmp.lt.s32.totalorder %s21, %s20
      %s226 = scalar_select %p225, %s21, %s20
      %p227 = scmp.lt.s32.totalorder %s19, 1
      %s228 = scalar_select %p227, %s19, 1
      %p229 = scmp.lt.s32.totalorder %s226, 1
      %s230 = scalar_select %p229, %s226, 1
      %s231 = smul.addr %s228, 2
      %s232 = sadd.s32 %s230, %s231
      %s233 = smul.addr %s232, 4
      %s234 = scalar_lea.vmem %s1, %s233
      %p235 = pneg %p88
      %p236 = pneg %p85
      %p237 = scmp.lt.s32.totalorder %s21, %s20
      %s238 = scalar_select %p237, %s21, %s20
      %p239 = scmp.lt.s32.totalorder %s19, 1
      %s240 = scalar_select %p239, %s19, 1
      %p241 = scmp.lt.s32.totalorder %s238, 1
      %s242 = scalar_select %p241, %s238, 1
      %s243 = smul.addr %s240, 2
      %s244 = sadd.s32 %s242, %s243
      %s245 = smul.addr %s244, 4
      %s246 = scalar_lea.vmem %s2, %s245
      %p247 = pneg %p120
      %p248 = pneg %p117
      %p249 = pneg %p148
      %p250 = pneg %p145
      %p251 = scmp.lt.s32.totalorder %s19, 1
      %s252 = scalar_select %p251, %s19, 1
      %p253 = scmp.lt.s32.totalorder %s20, 1
      %s254 = scalar_select %p253, %s20, 1
      %s255 = smul.addr %s252, 2
      %s256 = sadd.s32 %s254, %s255
      %s257 = smul.addr %s256, 4
      %s258 = scalar_lea.vmem %s3, %s257
      %p259 = scmp.lt.s32.totalorder %s19, 1
      %s260 = scalar_select %p259, %s19, 1
      %p261 = scmp.lt.s32.totalorder %s20, 1
      %s262 = scalar_select %p261, %s20, 1
      %s263 = smul.addr %s260, 2
      %s264 = sadd.s32 %s262, %s263
      %s265 = smul.addr %s264, 4
      %s266 = scalar_lea.vmem %s0, %s265
      %p267 = scmp.lt.s32.totalorder %s21, %s20
      %s268 = scalar_select %p267, %s21, %s20
      %p269 = scmp.lt.s32.totalorder %s19, 1
      %s270 = scalar_select %p269, %s19, 1
      %p271 = scmp.lt.s32.totalorder %s268, 1
      %s272 = scalar_select %p271, %s268, 1
      %s273 = smul.addr %s270, 2
      %s274 = sadd.s32 %s272, %s273
      %s275 = smul.addr %s274, 4
      %s276 = scalar_lea.vmem %s1, %s275
      %p277 = scmp.lt.s32.totalorder %s21, %s20
      %s278 = scalar_select %p277, %s21, %s20
      %p279 = scmp.lt.s32.totalorder %s21, %s20
      %s280 = scalar_select %p279, %s21, %s20
      %p281 = scmp.lt.s32.totalorder %s19, 1
      %s282 = scalar_select %p281, %s19, 1
      %p283 = scmp.lt.s32.totalorder %s280, 1
      %s284 = scalar_select %p283, %s280, 1
      %s285 = smul.addr %s282, 2
      %s286 = sadd.s32 %s284, %s285
      %s287 = smul.addr %s286, 4
      %s288 = scalar_lea.vmem %s2, %s287
      %p289 = scmp.lt.s32.totalorder %s21, %s20
      %s290 = scalar_select %p289, %s21, %s20
      %p291 = scmp.lt.s32.totalorder %s19, 1
      %s292 = scalar_select %p291, %s19, 1
      %p293 = scmp.lt.s32.totalorder %s20, 1
      %s294 = scalar_select %p293, %s20, 1
      %s295 = smul.addr %s292, 2
      %s296 = sadd.s32 %s294, %s295
      %s297 = smul.addr %s296, 4
      %s298 = scalar_lea.vmem %s3, %s297
      %p300 = scmp.eq.s32.totalorder %s21, 0
      // Predicated region
      $region33: #{multi_head_attention.4} parent=31 // pred_check
        %p301 = pneg %p300
      $region34: #{multi_head_attention.4} parent=31 // pred_check_branch
        %303 = sbr.rel (%p301) target = $region36
      $region35: #{multi_head_attention.4} parent=31 // pred_region
        %vm304 = vcmask 7168
        %305 = vst.msk [vmem:[#allocation2] sm:$0xff] %vm304, -1e+30
        %306 = vst.msk [vmem:[#allocation2 + $0x8] sm:$0xff] %vm304, -1e+30
        %307 = vst.msk [vmem:[#allocation2 + $0x10] sm:$0xff] %vm304, -1e+30
        %308 = vst.msk [vmem:[#allocation2 + $0x18] sm:$0xff] %vm304, -1e+30
        %309 = vst.msk [vmem:[#allocation3] sm:$0xff] %vm304, 0.0
        %310 = vst.msk [vmem:[#allocation3 + $0x8] sm:$0xff] %vm304, 0.0
        %311 = vst.msk [vmem:[#allocation3 + $0x10] sm:$0xff] %vm304, 0.0
        %312 = vst.msk [vmem:[#allocation3 + $0x18] sm:$0xff] %vm304, 0.0
        %vm313 = vcmask 64512
        %314 = vst.msk [vmem:[#allocation4] sm:$0xff] %vm313, 0.0
        %315 = vst.msk [vmem:[#allocation4 + $0x8] sm:$0xff] %vm313, 0.0
        %316 = vst.msk [vmem:[#allocation4 + $0x10] sm:$0xff] %vm313, 0.0
        %317 = vst.msk [vmem:[#allocation4 + $0x18] sm:$0xff] %vm313, 0.0
      $region36: #{multi_head_attention.4} parent=31 // pred_fallthru
        _
      %p318 = scmp.lt.s32.totalorder %s21, %s20
      // Predicated region
      $region37: #{multi_head_attention.4} parent=31 // pred_check
        %p319 = pneg %p318
      $region38: #{multi_head_attention.4} parent=31 // pred_check_branch
        %321 = sbr.rel (%p319) target = $region40
      $region39: #{multi_head_attention.4} parent=31 // pred_region
        %v322 = vld [vmem:[%s266] sm:$0xf]
        %v323 = vld [vmem:[%s276] sm:$0xf]
        %v324 = vld [vmem:[%s288] sm:$0xf]
        %vm325 = vcmask 64512
        %v327 = vsel %vm325, %v322, 0
        %v330 = vsel %vm325, %v323, 0
        %332 = vmatpush.bf16.xpose.msra.mxu0 0
        %333 = vmatpush.bf16.xpose.msra.mxu0 0
        %334 = vmatpush.bf16.xpose.msra.mxu0 0
        %335 = vmatpush.bf16.xpose.msra.mxu0 0
        %336 = vmatpush.bf16.xpose.msra.mxu0 0
        %337 = vmatpush.bf16.xpose.msra.mxu0 0
        %338 = vmatpush.bf16.xpose.msra.mxu0 0
        %339 = vmatpush.bf16.xpose.msra.mxu0 %v330
        %340 = vmatmul.bf16.gmra.mxu0 %v327
        %v341 = vpop.f32.mrf.mxu0
        %v342 = vadd.f32 0.0, %v341
        %v343 = vpop.f32.mrf.mxu0
        %344 = vdwg.mxu0
        %v345 = vld [vmem:[#allocation2] sm:$0xff]
        %v346 = vsel %vm325, %v342, -inf
        %347 = vmax.xlane.f32.xlu0 %v346
        %v348 = vpop.xlane.xlu0 %347
        %v349 = vmax.f32 %v345, %v348
        %v350 = vsub.f32 %v345, %v349
        %v351 = vmul.f32 %v350, 1.442695
        %v352 = vpow.pop %v351
        %354 = vset.pattern.permute.xlu0 0
        %355 = vperm.xlu0 %354, %v349
        %v356 = vpop.permute.xlu0 %355
        %v358 = vsub.f32 %v342, %v356
        %v359 = vmul.f32 %v358, 1.442695
        %v360 = vpow.pop %v359
        %v361 = vld [vmem:[#allocation3] sm:$0xff]
        %v362 = vmul.f32 %v352, %v361
        %v363 = vsel %vm325, %v360, 0.0
        %364 = vadd.xlane.f32.xlu0 %v363
        %v365 = vpop.xlane.xlu0 %364
        %v366 = vadd.f32 %v362, %v365
        %vm367 = vcmask 7168
        %368 = vst.msk [vmem:[#allocation3] sm:$0xff] %vm367, %v366
        %v369 = vld [vmem:[#allocation4] sm:$0xff]
        %371 = vset.pattern.permute.xlu0 0
        %372 = vperm.xlu0 %371, %v352
        %v373 = vpop.permute.xlu0 %372
        %v375 = vmul.f32 %v373, %v369
        %v376 = vpack.c.bf16 %v360, %v360
        %v378 = vsel %vm325, %v376, 0
        %vm380 = vcmask 1043456
        %v382 = vsel %vm380, %v324, 0
        %384 = vmatpush.bf16.msra.mxu0 0
        %385 = vmatpush.bf16.msra.mxu0 0
        %386 = vmatpush.bf16.msra.mxu0 0
        %387 = vmatpush.bf16.msra.mxu0 0
        %388 = vmatpush.bf16.msra.mxu0 0
        %389 = vmatpush.bf16.msra.mxu0 0
        %390 = vmatpush.bf16.msra.mxu0 0
        %391 = vmatpush.bf16.msra.mxu0 %v382
        %392 = vmatmul.bf16.gmra.mxu0 %v378
        %v393 = vpop.f32.mrf.mxu0
        %v394 = vadd.f32 0.0, %v393
        %v395 = vpop.f32.mrf.mxu0
        %396 = vdwg.mxu0
        %v397 = vadd.f32 %v375, %v394
        %398 = vst.msk [vmem:[#allocation4] sm:$0xff] %vm325, %v397
        %399 = vst.msk [vmem:[#allocation2] sm:$0xff] %vm367, %v349
        %v401 = vunpack.c.l.b16 %v322
        %v402 = vpack.c.b16 %v401, %v401
        %403 = vrot.lane.b32.xlu0 %v402, 120
        %v404 = vpop.permute.xlu0 %403
        %v406 = vunpack.c.l.b16 %v323
        %v407 = vpack.c.b16 %v406, %v406
        %408 = vrot.lane.b32.xlu0 %v407, 120
        %v409 = vpop.permute.xlu0 %408
        %v411 = vsel %vm325, %v404, 0
        %v414 = vsel %vm325, %v409, 0
        %416 = vmatpush.bf16.xpose.msra.mxu0 0
        %417 = vmatpush.bf16.xpose.msra.mxu0 0
        %418 = vmatpush.bf16.xpose.msra.mxu0 0
        %419 = vmatpush.bf16.xpose.msra.mxu0 0
        %420 = vmatpush.bf16.xpose.msra.mxu0 0
        %421 = vmatpush.bf16.xpose.msra.mxu0 0
        %422 = vmatpush.bf16.xpose.msra.mxu0 0
        %423 = vmatpush.bf16.xpose.msra.mxu0 %v414
        %424 = vmatmul.bf16.gmra.mxu0 %v411
        %v425 = vpop.f32.mrf.mxu0
        %v426 = vadd.f32 0.0, %v425
        %v427 = vpop.f32.mrf.mxu0
        %428 = vdwg.mxu0
        %s429 = scalar_lea.vmem [#allocation2], 8
        %v430 = vld [vmem:[%s429] sm:$0xff]
        %v431 = vsel %vm325, %v426, -inf
        %432 = vmax.xlane.f32.xlu0 %v431
        %v433 = vpop.xlane.xlu0 %432
        %v434 = vmax.f32 %v430, %v433
        %v435 = vsub.f32 %v430, %v434
        %v436 = vmul.f32 %v435, 1.442695
        %v437 = vpow.pop %v436
        %439 = vset.pattern.permute.xlu0 0
        %440 = vperm.xlu0 %439, %v434
        %v441 = vpop.permute.xlu0 %440
        %v443 = vsub.f32 %v426, %v441
        %v444 = vmul.f32 %v443, 1.442695
        %v445 = vpow.pop %v444
        %s446 = scalar_lea.vmem [#allocation3], 8
        %v447 = vld [vmem:[%s446] sm:$0xff]
        %v448 = vmul.f32 %v437, %v447
        %v449 = vsel %vm325, %v445, 0.0
        %450 = vadd.xlane.f32.xlu0 %v449
        %v451 = vpop.xlane.xlu0 %450
        %v452 = vadd.f32 %v448, %v451
        %453 = vst.msk [vmem:[%s446] sm:$0xff] %vm367, %v452
        %s454 = scalar_lea.vmem [#allocation4], 8
        %v455 = vld [vmem:[%s454] sm:$0xff]
        %457 = vset.pattern.permute.xlu0 0
        %458 = vperm.xlu0 %457, %v437
        %v459 = vpop.permute.xlu0 %458
        %v461 = vmul.f32 %v459, %v455
        %v462 = vpack.c.bf16 %v445, %v445
        %v464 = vunpack.c.l.b16 %v324
        %v465 = vpack.c.b16 %v464, %v464
        %466 = vrot.lane.b32.xlu0 %v465, 120
        %v467 = vpop.permute.xlu0 %466
        %v469 = vsel %vm325, %v462, 0
        %v472 = vsel %vm380, %v467, 0
        %474 = vmatpush.bf16.msra.mxu0 0
        %475 = vmatpush.bf16.msra.mxu0 0
        %476 = vmatpush.bf16.msra.mxu0 0
        %477 = vmatpush.bf16.msra.mxu0 0
        %478 = vmatpush.bf16.msra.mxu0 0
        %479 = vmatpush.bf16.msra.mxu0 0
        %480 = vmatpush.bf16.msra.mxu0 0
        %481 = vmatpush.bf16.msra.mxu0 %v472
        %482 = vmatmul.bf16.gmra.mxu0 %v469
        %v483 = vpop.f32.mrf.mxu0
        %v484 = vadd.f32 0.0, %v483
        %v485 = vpop.f32.mrf.mxu0
        %486 = vdwg.mxu0
        %v487 = vadd.f32 %v461, %v484
        %488 = vst.msk [vmem:[%s454] sm:$0xff] %vm325, %v487
        %489 = vst.msk [vmem:[%s429] sm:$0xff] %vm367, %v434
        %490 = vrot.lane.b32.xlu0 %v402, 112
        %v491 = vpop.permute.xlu0 %490
        %492 = vrot.lane.b32.xlu0 %v407, 112
        %v493 = vpop.permute.xlu0 %492
        %v495 = vsel %vm325, %v491, 0
        %v498 = vsel %vm325, %v493, 0
        %500 = vmatpush.bf16.xpose.msra.mxu0 0
        %501 = vmatpush.bf16.xpose.msra.mxu0 0
        %502 = vmatpush.bf16.xpose.msra.mxu0 0
        %503 = vmatpush.bf16.xpose.msra.mxu0 0
        %504 = vmatpush.bf16.xpose.msra.mxu0 0
        %505 = vmatpush.bf16.xpose.msra.mxu0 0
        %506 = vmatpush.bf16.xpose.msra.mxu0 0
        %507 = vmatpush.bf16.xpose.msra.mxu0 %v498
        %508 = vmatmul.bf16.gmra.mxu0 %v495
        %v509 = vpop.f32.mrf.mxu0
        %v510 = vadd.f32 0.0, %v509
        %v511 = vpop.f32.mrf.mxu0
        %512 = vdwg.mxu0
        %s513 = scalar_lea.vmem [#allocation2], 16
        %v514 = vld [vmem:[%s513] sm:$0xff]
        %v515 = vsel %vm325, %v510, -inf
        %516 = vmax.xlane.f32.xlu0 %v515
        %v517 = vpop.xlane.xlu0 %516
        %v518 = vmax.f32 %v514, %v517
        %v519 = vsub.f32 %v514, %v518
        %v520 = vmul.f32 %v519, 1.442695
        %v521 = vpow.pop %v520
        %523 = vset.pattern.permute.xlu0 0
        %524 = vperm.xlu0 %523, %v518
        %v525 = vpop.permute.xlu0 %524
        %v527 = vsub.f32 %v510, %v525
        %v528 = vmul.f32 %v527, 1.442695
        %v529 = vpow.pop %v528
        %s530 = scalar_lea.vmem [#allocation3], 16
        %v531 = vld [vmem:[%s530] sm:$0xff]
        %v532 = vmul.f32 %v521, %v531
        %v533 = vsel %vm325, %v529, 0.0
        %534 = vadd.xlane.f32.xlu0 %v533
        %v535 = vpop.xlane.xlu0 %534
        %v536 = vadd.f32 %v532, %v535
        %537 = vst.msk [vmem:[%s530] sm:$0xff] %vm367, %v536
        %s538 = scalar_lea.vmem [#allocation4], 16
        %v539 = vld [vmem:[%s538] sm:$0xff]
        %541 = vset.pattern.permute.xlu0 0
        %542 = vperm.xlu0 %541, %v521
        %v543 = vpop.permute.xlu0 %542
        %v545 = vmul.f32 %v543, %v539
        %v546 = vpack.c.bf16 %v529, %v529
        %547 = vrot.lane.b32.xlu0 %v465, 112
        %v548 = vpop.permute.xlu0 %547
        %v550 = vsel %vm325, %v546, 0
        %v553 = vsel %vm380, %v548, 0
        %555 = vmatpush.bf16.msra.mxu0 0
        %556 = vmatpush.bf16.msra.mxu0 0
        %557 = vmatpush.bf16.msra.mxu0 0
        %558 = vmatpush.bf16.msra.mxu0 0
        %559 = vmatpush.bf16.msra.mxu0 0
        %560 = vmatpush.bf16.msra.mxu0 0
        %561 = vmatpush.bf16.msra.mxu0 0
        %562 = vmatpush.bf16.msra.mxu0 %v553
        %563 = vmatmul.bf16.gmra.mxu0 %v550
        %v564 = vpop.f32.mrf.mxu0
        %v565 = vadd.f32 0.0, %v564
        %v566 = vpop.f32.mrf.mxu0
        %567 = vdwg.mxu0
        %v568 = vadd.f32 %v545, %v565
        %569 = vst.msk [vmem:[%s538] sm:$0xff] %vm325, %v568
        %570 = vst.msk [vmem:[%s513] sm:$0xff] %vm367, %v518
        %571 = vrot.lane.b32.xlu0 %v402, 104
        %v572 = vpop.permute.xlu0 %571
        %573 = vrot.lane.b32.xlu0 %v407, 104
        %v574 = vpop.permute.xlu0 %573
        %v576 = vsel %vm325, %v572, 0
        %v579 = vsel %vm325, %v574, 0
        %581 = vmatpush.bf16.xpose.msra.mxu0 0
        %582 = vmatpush.bf16.xpose.msra.mxu0 0
        %583 = vmatpush.bf16.xpose.msra.mxu0 0
        %584 = vmatpush.bf16.xpose.msra.mxu0 0
        %585 = vmatpush.bf16.xpose.msra.mxu0 0
        %586 = vmatpush.bf16.xpose.msra.mxu0 0
        %587 = vmatpush.bf16.xpose.msra.mxu0 0
        %588 = vmatpush.bf16.xpose.msra.mxu0 %v579
        %589 = vmatmul.bf16.gmra.mxu0 %v576
        %v590 = vpop.f32.mrf.mxu0
        %v591 = vadd.f32 0.0, %v590
        %v592 = vpop.f32.mrf.mxu0
        %593 = vdwg.mxu0
        %s594 = scalar_lea.vmem [#allocation2], 24
        %v595 = vld [vmem:[%s594] sm:$0xff]
        %v596 = vsel %vm325, %v591, -inf
        %597 = vmax.xlane.f32.xlu0 %v596
        %v598 = vpop.xlane.xlu0 %597
        %v599 = vmax.f32 %v595, %v598
        %v600 = vsub.f32 %v595, %v599
        %v601 = vmul.f32 %v600, 1.442695
        %v602 = vpow.pop %v601
        %604 = vset.pattern.permute.xlu0 0
        %605 = vperm.xlu0 %604, %v599
        %v606 = vpop.permute.xlu0 %605
        %v608 = vsub.f32 %v591, %v606
        %v609 = vmul.f32 %v608, 1.442695
        %v610 = vpow.pop %v609
        %s611 = scalar_lea.vmem [#allocation3], 24
        %v612 = vld [vmem:[%s611] sm:$0xff]
        %v613 = vmul.f32 %v602, %v612
        %v614 = vsel %vm325, %v610, 0.0
        %615 = vadd.xlane.f32.xlu0 %v614
        %v616 = vpop.xlane.xlu0 %615
        %v617 = vadd.f32 %v613, %v616
        %618 = vst.msk [vmem:[%s611] sm:$0xff] %vm367, %v617
        %s619 = scalar_lea.vmem [#allocation4], 24
        %v620 = vld [vmem:[%s619] sm:$0xff]
        %622 = vset.pattern.permute.xlu0 0
        %623 = vperm.xlu0 %622, %v602
        %v624 = vpop.permute.xlu0 %623
        %v626 = vmul.f32 %v624, %v620
        %v627 = vpack.c.bf16 %v610, %v610
        %628 = vrot.lane.b32.xlu0 %v465, 104
        %v629 = vpop.permute.xlu0 %628
        %v631 = vsel %vm325, %v627, 0
        %v634 = vsel %vm380, %v629, 0
        %636 = vmatpush.bf16.msra.mxu0 0
        %637 = vmatpush.bf16.msra.mxu0 0
        %638 = vmatpush.bf16.msra.mxu0 0
        %639 = vmatpush.bf16.msra.mxu0 0
        %640 = vmatpush.bf16.msra.mxu0 0
        %641 = vmatpush.bf16.msra.mxu0 0
        %642 = vmatpush.bf16.msra.mxu0 0
        %643 = vmatpush.bf16.msra.mxu0 %v634
        %644 = vmatmul.bf16.gmra.mxu0 %v631
        %v645 = vpop.f32.mrf.mxu0
        %v646 = vadd.f32 0.0, %v645
        %v647 = vpop.f32.mrf.mxu0
        %648 = vdwg.mxu0
        %v649 = vadd.f32 %v626, %v646
        %650 = vst.msk [vmem:[%s619] sm:$0xff] %vm325, %v649
        %651 = vst.msk [vmem:[%s594] sm:$0xff] %vm367, %v599
      $region40: #{multi_head_attention.4} parent=31 // pred_fallthru
        _
      %p652 = scmp.eq.s32.totalorder %s21, %s20
      // Predicated region
      $region41: #{multi_head_attention.4} parent=31 // pred_check
        %p653 = pneg %p652
      $region42: #{multi_head_attention.4} parent=31 // pred_check_branch
        %655 = sbr.rel (%p653) target = $region44
      $region43: #{multi_head_attention.4} parent=31 // pred_region
        %v656 = vld [vmem:[%s266] sm:$0xf]
        %v657 = vld [vmem:[%s276] sm:$0xf]
        %v658 = vld [vmem:[%s288] sm:$0xf]
        %v659 = vlaneseq
        %v660 = vshrl.u32 %v659, 7
        %v661 = vlaneseq
        %v662 = vand.u32 %v661, 127
        %vm663 = vcmp.le.s32.totalorder %v662, %v660
        %v664 = vsel %vm663, 0.0, -1e+30
        %vm665 = vcmask 64512
        %v667 = vsel %vm665, %v656, 0
        %v670 = vsel %vm665, %v657, 0
        %672 = vmatpush.bf16.xpose.msra.mxu0 0
        %673 = vmatpush.bf16.xpose.msra.mxu0 0
        %674 = vmatpush.bf16.xpose.msra.mxu0 0
        %675 = vmatpush.bf16.xpose.msra.mxu0 0
        %676 = vmatpush.bf16.xpose.msra.mxu0 0
        %677 = vmatpush.bf16.xpose.msra.mxu0 0
        %678 = vmatpush.bf16.xpose.msra.mxu0 0
        %679 = vmatpush.bf16.xpose.msra.mxu0 %v670
        %680 = vmatmul.bf16.gmra.mxu0 %v667
        %v681 = vpop.f32.mrf.mxu0
        %v682 = vadd.f32 %v664, %v681
        %v683 = vpop.f32.mrf.mxu0
        %684 = vdwg.mxu0
        %v685 = vld [vmem:[#allocation2] sm:$0xff]
        %v686 = vsel %vm665, %v682, -inf
        %687 = vmax.xlane.f32.xlu0 %v686
        %v688 = vpop.xlane.xlu0 %687
        %v689 = vmax.f32 %v685, %v688
        %v690 = vsub.f32 %v685, %v689
        %v691 = vmul.f32 %v690, 1.442695
        %v692 = vpow.pop %v691
        %694 = vset.pattern.permute.xlu0 0
        %695 = vperm.xlu0 %694, %v689
        %v696 = vpop.permute.xlu0 %695
        %v698 = vsub.f32 %v682, %v696
        %v699 = vmul.f32 %v698, 1.442695
        %v700 = vpow.pop %v699
        %v701 = vld [vmem:[#allocation3] sm:$0xff]
        %v702 = vmul.f32 %v692, %v701
        %v703 = vsel %vm665, %v700, 0.0
        %704 = vadd.xlane.f32.xlu0 %v703
        %v705 = vpop.xlane.xlu0 %704
        %v706 = vadd.f32 %v702, %v705
        %vm707 = vcmask 7168
        %708 = vst.msk [vmem:[#allocation3] sm:$0xff] %vm707, %v706
        %v709 = vld [vmem:[#allocation4] sm:$0xff]
        %711 = vset.pattern.permute.xlu0 0
        %712 = vperm.xlu0 %711, %v692
        %v713 = vpop.permute.xlu0 %712
        %v715 = vmul.f32 %v713, %v709
        %v716 = vpack.c.bf16 %v700, %v700
        %v718 = vsel %vm665, %v716, 0
        %vm720 = vcmask 1043456
        %v722 = vsel %vm720, %v658, 0
        %724 = vmatpush.bf16.msra.mxu0 0
        %725 = vmatpush.bf16.msra.mxu0 0
        %726 = vmatpush.bf16.msra.mxu0 0
        %727 = vmatpush.bf16.msra.mxu0 0
        %728 = vmatpush.bf16.msra.mxu0 0
        %729 = vmatpush.bf16.msra.mxu0 0
        %730 = vmatpush.bf16.msra.mxu0 0
        %731 = vmatpush.bf16.msra.mxu0 %v722
        %732 = vmatmul.bf16.gmra.mxu0 %v718
        %v733 = vpop.f32.mrf.mxu0
        %v734 = vadd.f32 0.0, %v733
        %v735 = vpop.f32.mrf.mxu0
        %736 = vdwg.mxu0
        %v737 = vadd.f32 %v715, %v734
        %738 = vst.msk [vmem:[#allocation4] sm:$0xff] %vm665, %v737
        %739 = vst.msk [vmem:[#allocation2] sm:$0xff] %vm707, %v689
        %v741 = vunpack.c.l.b16 %v656
        %v742 = vpack.c.b16 %v741, %v741
        %743 = vrot.lane.b32.xlu0 %v742, 120
        %v744 = vpop.permute.xlu0 %743
        %v746 = vunpack.c.l.b16 %v657
        %v747 = vpack.c.b16 %v746, %v746
        %748 = vrot.lane.b32.xlu0 %v747, 120
        %v749 = vpop.permute.xlu0 %748
        %v751 = vsel %vm665, %v744, 0
        %v754 = vsel %vm665, %v749, 0
        %756 = vmatpush.bf16.xpose.msra.mxu0 0
        %757 = vmatpush.bf16.xpose.msra.mxu0 0
        %758 = vmatpush.bf16.xpose.msra.mxu0 0
        %759 = vmatpush.bf16.xpose.msra.mxu0 0
        %760 = vmatpush.bf16.xpose.msra.mxu0 0
        %761 = vmatpush.bf16.xpose.msra.mxu0 0
        %762 = vmatpush.bf16.xpose.msra.mxu0 0
        %763 = vmatpush.bf16.xpose.msra.mxu0 %v754
        %764 = vmatmul.bf16.gmra.mxu0 %v751
        %v765 = vpop.f32.mrf.mxu0
        %v766 = vadd.f32 %v664, %v765
        %v767 = vpop.f32.mrf.mxu0
        %768 = vdwg.mxu0
        %s769 = scalar_lea.vmem [#allocation2], 8
        %v770 = vld [vmem:[%s769] sm:$0xff]
        %v771 = vsel %vm665, %v766, -inf
        %772 = vmax.xlane.f32.xlu0 %v771
        %v773 = vpop.xlane.xlu0 %772
        %v774 = vmax.f32 %v770, %v773
        %v775 = vsub.f32 %v770, %v774
        %v776 = vmul.f32 %v775, 1.442695
        %v777 = vpow.pop %v776
        %779 = vset.pattern.permute.xlu0 0
        %780 = vperm.xlu0 %779, %v774
        %v781 = vpop.permute.xlu0 %780
        %v783 = vsub.f32 %v766, %v781
        %v784 = vmul.f32 %v783, 1.442695
        %v785 = vpow.pop %v784
        %s786 = scalar_lea.vmem [#allocation3], 8
        %v787 = vld [vmem:[%s786] sm:$0xff]
        %v788 = vmul.f32 %v777, %v787
        %v789 = vsel %vm665, %v785, 0.0
        %790 = vadd.xlane.f32.xlu0 %v789
        %v791 = vpop.xlane.xlu0 %790
        %v792 = vadd.f32 %v788, %v791
        %793 = vst.msk [vmem:[%s786] sm:$0xff] %vm707, %v792
        %s794 = scalar_lea.vmem [#allocation4], 8
        %v795 = vld [vmem:[%s794] sm:$0xff]
        %797 = vset.pattern.permute.xlu0 0
        %798 = vperm.xlu0 %797, %v777
        %v799 = vpop.permute.xlu0 %798
        %v801 = vmul.f32 %v799, %v795
        %v802 = vpack.c.bf16 %v785, %v785
        %v804 = vunpack.c.l.b16 %v658
        %v805 = vpack.c.b16 %v804, %v804
        %806 = vrot.lane.b32.xlu0 %v805, 120
        %v807 = vpop.permute.xlu0 %806
        %v809 = vsel %vm665, %v802, 0
        %v812 = vsel %vm720, %v807, 0
        %814 = vmatpush.bf16.msra.mxu0 0
        %815 = vmatpush.bf16.msra.mxu0 0
        %816 = vmatpush.bf16.msra.mxu0 0
        %817 = vmatpush.bf16.msra.mxu0 0
        %818 = vmatpush.bf16.msra.mxu0 0
        %819 = vmatpush.bf16.msra.mxu0 0
        %820 = vmatpush.bf16.msra.mxu0 0
        %821 = vmatpush.bf16.msra.mxu0 %v812
        %822 = vmatmul.bf16.gmra.mxu0 %v809
        %v823 = vpop.f32.mrf.mxu0
        %v824 = vadd.f32 0.0, %v823
        %v825 = vpop.f32.mrf.mxu0
        %826 = vdwg.mxu0
        %v827 = vadd.f32 %v801, %v824
        %828 = vst.msk [vmem:[%s794] sm:$0xff] %vm665, %v827
        %829 = vst.msk [vmem:[%s769] sm:$0xff] %vm707, %v774
        %830 = vrot.lane.b32.xlu0 %v742, 112
        %v831 = vpop.permute.xlu0 %830
        %832 = vrot.lane.b32.xlu0 %v747, 112
        %v833 = vpop.permute.xlu0 %832
        %v835 = vsel %vm665, %v831, 0
        %v838 = vsel %vm665, %v833, 0
        %840 = vmatpush.bf16.xpose.msra.mxu0 0
        %841 = vmatpush.bf16.xpose.msra.mxu0 0
        %842 = vmatpush.bf16.xpose.msra.mxu0 0
        %843 = vmatpush.bf16.xpose.msra.mxu0 0
        %844 = vmatpush.bf16.xpose.msra.mxu0 0
        %845 = vmatpush.bf16.xpose.msra.mxu0 0
        %846 = vmatpush.bf16.xpose.msra.mxu0 0
        %847 = vmatpush.bf16.xpose.msra.mxu0 %v838
        %848 = vmatmul.bf16.gmra.mxu0 %v835
        %v849 = vpop.f32.mrf.mxu0
        %v850 = vadd.f32 %v664, %v849
        %v851 = vpop.f32.mrf.mxu0
        %852 = vdwg.mxu0
        %s853 = scalar_lea.vmem [#allocation2], 16
        %v854 = vld [vmem:[%s853] sm:$0xff]
        %v855 = vsel %vm665, %v850, -inf
        %856 = vmax.xlane.f32.xlu0 %v855
        %v857 = vpop.xlane.xlu0 %856
        %v858 = vmax.f32 %v854, %v857
        %v859 = vsub.f32 %v854, %v858
        %v860 = vmul.f32 %v859, 1.442695
        %v861 = vpow.pop %v860
        %863 = vset.pattern.permute.xlu0 0
        %864 = vperm.xlu0 %863, %v858
        %v865 = vpop.permute.xlu0 %864
        %v867 = vsub.f32 %v850, %v865
        %v868 = vmul.f32 %v867, 1.442695
        %v869 = vpow.pop %v868
        %s870 = scalar_lea.vmem [#allocation3], 16
        %v871 = vld [vmem:[%s870] sm:$0xff]
        %v872 = vmul.f32 %v861, %v871
        %v873 = vsel %vm665, %v869, 0.0
        %874 = vadd.xlane.f32.xlu0 %v873
        %v875 = vpop.xlane.xlu0 %874
        %v876 = vadd.f32 %v872, %v875
        %877 = vst.msk [vmem:[%s870] sm:$0xff] %vm707, %v876
        %s878 = scalar_lea.vmem [#allocation4], 16
        %v879 = vld [vmem:[%s878] sm:$0xff]
        %881 = vset.pattern.permute.xlu0 0
        %882 = vperm.xlu0 %881, %v861
        %v883 = vpop.permute.xlu0 %882
        %v885 = vmul.f32 %v883, %v879
        %v886 = vpack.c.bf16 %v869, %v869
        %887 = vrot.lane.b32.xlu0 %v805, 112
        %v888 = vpop.permute.xlu0 %887
        %v890 = vsel %vm665, %v886, 0
        %v893 = vsel %vm720, %v888, 0
        %895 = vmatpush.bf16.msra.mxu0 0
        %896 = vmatpush.bf16.msra.mxu0 0
        %897 = vmatpush.bf16.msra.mxu0 0
        %898 = vmatpush.bf16.msra.mxu0 0
        %899 = vmatpush.bf16.msra.mxu0 0
        %900 = vmatpush.bf16.msra.mxu0 0
        %901 = vmatpush.bf16.msra.mxu0 0
        %902 = vmatpush.bf16.msra.mxu0 %v893
        %903 = vmatmul.bf16.gmra.mxu0 %v890
        %v904 = vpop.f32.mrf.mxu0
        %v905 = vadd.f32 0.0, %v904
        %v906 = vpop.f32.mrf.mxu0
        %907 = vdwg.mxu0
        %v908 = vadd.f32 %v885, %v905
        %909 = vst.msk [vmem:[%s878] sm:$0xff] %vm665, %v908
        %910 = vst.msk [vmem:[%s853] sm:$0xff] %vm707, %v858
        %911 = vrot.lane.b32.xlu0 %v742, 104
        %v912 = vpop.permute.xlu0 %911
        %913 = vrot.lane.b32.xlu0 %v747, 104
        %v914 = vpop.permute.xlu0 %913
        %v916 = vsel %vm665, %v912, 0
        %v919 = vsel %vm665, %v914, 0
        %921 = vmatpush.bf16.xpose.msra.mxu0 0
        %922 = vmatpush.bf16.xpose.msra.mxu0 0
        %923 = vmatpush.bf16.xpose.msra.mxu0 0
        %924 = vmatpush.bf16.xpose.msra.mxu0 0
        %925 = vmatpush.bf16.xpose.msra.mxu0 0
        %926 = vmatpush.bf16.xpose.msra.mxu0 0
        %927 = vmatpush.bf16.xpose.msra.mxu0 0
        %928 = vmatpush.bf16.xpose.msra.mxu0 %v919
        %929 = vmatmul.bf16.gmra.mxu0 %v916
        %v930 = vpop.f32.mrf.mxu0
        %v931 = vadd.f32 %v664, %v930
        %v932 = vpop.f32.mrf.mxu0
        %933 = vdwg.mxu0
        %s934 = scalar_lea.vmem [#allocation2], 24
        %v935 = vld [vmem:[%s934] sm:$0xff]
        %v936 = vsel %vm665, %v931, -inf
        %937 = vmax.xlane.f32.xlu0 %v936
        %v938 = vpop.xlane.xlu0 %937
        %v939 = vmax.f32 %v935, %v938
        %v940 = vsub.f32 %v935, %v939
        %v941 = vmul.f32 %v940, 1.442695
        %v942 = vpow.pop %v941
        %944 = vset.pattern.permute.xlu0 0
        %945 = vperm.xlu0 %944, %v939
        %v946 = vpop.permute.xlu0 %945
        %v948 = vsub.f32 %v931, %v946
        %v949 = vmul.f32 %v948, 1.442695
        %v950 = vpow.pop %v949
        %s951 = scalar_lea.vmem [#allocation3], 24
        %v952 = vld [vmem:[%s951] sm:$0xff]
        %v953 = vmul.f32 %v942, %v952
        %v954 = vsel %vm665, %v950, 0.0
        %955 = vadd.xlane.f32.xlu0 %v954
        %v956 = vpop.xlane.xlu0 %955
        %v957 = vadd.f32 %v953, %v956
        %958 = vst.msk [vmem:[%s951] sm:$0xff] %vm707, %v957
        %s959 = scalar_lea.vmem [#allocation4], 24
        %v960 = vld [vmem:[%s959] sm:$0xff]
        %962 = vset.pattern.permute.xlu0 0
        %963 = vperm.xlu0 %962, %v942
        %v964 = vpop.permute.xlu0 %963
        %v966 = vmul.f32 %v964, %v960
        %v967 = vpack.c.bf16 %v950, %v950
        %968 = vrot.lane.b32.xlu0 %v805, 104
        %v969 = vpop.permute.xlu0 %968
        %v971 = vsel %vm665, %v967, 0
        %v974 = vsel %vm720, %v969, 0
        %976 = vmatpush.bf16.msra.mxu0 0
        %977 = vmatpush.bf16.msra.mxu0 0
        %978 = vmatpush.bf16.msra.mxu0 0
        %979 = vmatpush.bf16.msra.mxu0 0
        %980 = vmatpush.bf16.msra.mxu0 0
        %981 = vmatpush.bf16.msra.mxu0 0
        %982 = vmatpush.bf16.msra.mxu0 0
        %983 = vmatpush.bf16.msra.mxu0 %v974
        %984 = vmatmul.bf16.gmra.mxu0 %v971
        %v985 = vpop.f32.mrf.mxu0
        %v986 = vadd.f32 0.0, %v985
        %v987 = vpop.f32.mrf.mxu0
        %988 = vdwg.mxu0
        %v989 = vadd.f32 %v966, %v986
        %990 = vst.msk [vmem:[%s959] sm:$0xff] %vm665, %v989
        %991 = vst.msk [vmem:[%s934] sm:$0xff] %vm707, %v939
        %v992 = vld [vmem:[#allocation3] sm:$0xff]
        %v993 = vld [vmem:[#allocation3 + $0x8] sm:$0xff]
        %v994 = vld [vmem:[#allocation3 + $0x10] sm:$0xff]
        %v995 = vld [vmem:[#allocation3 + $0x18] sm:$0xff]
        %v996 = vrcp.pop %v992
        %v997 = vrcp.pop %v993
        %v998 = vrcp.pop %v994
        %v999 = vrcp.pop %v995
        %v1000 = vld [vmem:[#allocation4] sm:$0xff]
        %1002 = vset.pattern.permute.xlu0 0
        %1003 = vperm.xlu0 %1002, %v996
        %v1004 = vpop.permute.xlu0 %1003
        %v1006 = vmul.f32 %v1000, %v1004
        %v1007 = vpack.c.bf16 %v1006, %v1006
        %v1008 = vld [vmem:[%s794] sm:$0xff]
        %1010 = vset.pattern.permute.xlu0 0
        %1011 = vperm.xlu0 %1010, %v997
        %v1012 = vpop.permute.xlu0 %1011
        %v1014 = vmul.f32 %v1008, %v1012
        %v1015 = vpack.c.bf16 %v1014, %v1014
        %v1016 = vld [vmem:[%s878] sm:$0xff]
        %1018 = vset.pattern.permute.xlu0 0
        %1019 = vperm.xlu0 %1018, %v998
        %v1020 = vpop.permute.xlu0 %1019
        %v1022 = vmul.f32 %v1016, %v1020
        %v1023 = vpack.c.bf16 %v1022, %v1022
        %v1024 = vld [vmem:[%s959] sm:$0xff]
        %1026 = vset.pattern.permute.xlu0 0
        %1027 = vperm.xlu0 %1026, %v999
        %v1028 = vpop.permute.xlu0 %1027
        %v1030 = vmul.f32 %v1024, %v1028
        %v1031 = vpack.c.bf16 %v1030, %v1030
        %v1033 = vunpack.c.l.b16 %v1015
        %v1034 = vpack.c.b16 %v1033, %v1033
        %1035 = vrot.lane.b32.xlu0 %v1034, 8
        %v1036 = vpop.permute.xlu0 %1035
        %v1038 = vunpack.c.l.b16 %v1023
        %v1039 = vpack.c.b16 %v1038, %v1038
        %1040 = vrot.lane.b32.xlu0 %v1039, 16
        %v1041 = vpop.permute.xlu0 %1040
        %v1043 = vunpack.c.l.b16 %v1031
        %v1044 = vpack.c.b16 %v1043, %v1043
        %1045 = vrot.lane.b32.xlu0 %v1044, 24
        %v1046 = vpop.permute.xlu0 %1045
        %v1049 = vsel %vm665, %v1007, %v1036
        %vm1050 = vcmask 130048
        %v1052 = vsel %vm1050, %v1049, %v1041
        %vm1053 = vcmask 195584
        %v1055 = vsel %vm1053, %v1052, %v1046
        %vm1057 = vcmask 257024
        %1058 = vst.msk [vmem:[%s298] sm:$0xf] %vm1057, %v1055
      $region44: #{multi_head_attention.4} parent=31 // pred_fallthru
        _
      %p1059 = scmp.lt.s32.totalorder %s19, 1
      %s1060 = scalar_select %p1059, %s19, 1
      %p1061 = scmp.lt.s32.totalorder %s20, 1
      %s1062 = scalar_select %p1061, %s20, 1
      %s1063 = smul.addr %s1060, 2
      %s1064 = sadd.s32 %s1062, %s1063
      %s1065 = smul.addr %s1064, 4
      %s1066 = scalar_lea.vmem %s3, %s1065
      // Predicated region
      $region45: #{multi_head_attention.4} parent=31 // pred_check
        %p1067 = pneg %p145
      $region46: #{multi_head_attention.4} parent=31 // pred_check_branch
        %1069 = sbr.rel (%p1067) target = $region48
      $region47: #{multi_head_attention.4} parent=31 // pred_region
        _
      $region48: #{multi_head_attention.4} parent=31 // pred_fallthru
        _
    $region32: #{multi_head_attention.4} parent=5 // pred_fallthru
      _
    %p1070 = scmp.le.s32.totalorder 2, %s9
    // Predicated region
    $region49: #{multi_head_attention.4} parent=5 // pred_check
      %p1071 = pneg %p1070
    $region50: #{multi_head_attention.4} parent=5 // pred_check_branch
      %1073 = sbr.rel (%p1071) target = $region52
    $region51: #{multi_head_attention.4} parent=5 // pred_region
      %s1074 = ssub.s32 %s9, 2
      // Predicated region
      $region53: #{multi_head_attention.4} parent=51 // pred_check
        %p1075 = pneg %p151
      $region54: #{multi_head_attention.4} parent=51 // pred_check_branch
        %1077 = sbr.rel (%p1075) target = $region56
      $region55: #{multi_head_attention.4} parent=51 // pred_region
        %p1078 = scmp.lt.s32.totalorder %s22, 1
        %s1079 = scalar_select %p1078, %s22, 1
        %p1080 = scmp.lt.s32.totalorder %s23, 1
        %s1081 = scalar_select %p1080, %s23, 1
        %s1082 = smul.addr %s1079, 2
        %s1083 = sadd.s32 %s1081, %s1082
        %s1084 = smul.addr %s1083, 4
        %s1085 = scalar_lea.vmem %s3, %s1084
      $region56: #{multi_head_attention.4} parent=51 // pred_fallthru
        _
    $region52: #{multi_head_attention.4} parent=5 // pred_fallthru
      _
  $region6: #{multi_head_attention.4} parent=0 // loop_footer
    %s13 = sadd.s32 1, %s9
  $region7: #{multi_head_attention.4} parent=0 // loop_footer_branch
    %8 = sbr.rel target = $region3
  $region8: #{multi_head_attention.4} parent=0 // loop_exit
    _

</llo_original>
